<compile_context>
chip_gen: v5e
topology: v5e:2x2
jax: 0.10.0
libtpu: 0.0.40
codegen_flags: <defaults>
</compile_context>

<pallas_src>
import numpy as np
import jax
import jax.numpy as jnp
from jax import lax
from jax.experimental import pallas as pl
from jax.experimental.pallas import tpu as pltpu

LANE = 128


def _residual_block_kernel(x_ref, w1_ref, b1_ref, w2_ref, b2_ref, o_ref):
    """One grid step: NB images, both convs fused.

    x_ref : (NB, H, WCp)  bf16   packed activations (lane dim = W*C zero-padded)
    w*_ref: (3*WCp, WCp)  bf16   block-banded conv weights (BN scale folded in)
    b*_ref: (1, WCp)      f32    per-lane bias (conv bias + BN shift folded in)
    o_ref : (NB, H, WCp)  f32
    """
    nb, h, wcp = x_ref.shape
    m = nb * h

    # Residual kept in f32; matmul operands are cast to bf16 just before the dots.
    x = x_ref[...].astype(jnp.float32).reshape(m, wcp)

    # Per-image row-boundary masks: row r of the (NB*H) stack belongs to image r // H.
    row = lax.broadcasted_iota(jnp.int32, (m, wcp), 0)
    not_first = (row % h) != 0
    not_last = (row % h) != (h - 1)

    def conv3x3(a, w_ref, b_ref):
        # ky taps via XLU sublane roll + per-image boundary masking (no concat copies).
        up = jnp.where(not_first, pltpu.roll(a, shift=1, axis=0), 0.0)
        down = jnp.where(not_last, pltpu.roll(a, shift=m - 1, axis=0), 0.0)
        # Three accumulating K=WCp matmuls (one per ky slab); bf16 in, f32 accumulate.
        acc = jnp.dot(up.astype(jnp.bfloat16), w_ref[pl.ds(0 * wcp, wcp), :],
                      preferred_element_type=jnp.float32)
        acc = acc + jnp.dot(a.astype(jnp.bfloat16), w_ref[pl.ds(1 * wcp, wcp), :],
                            preferred_element_type=jnp.float32)
        acc = acc + jnp.dot(down.astype(jnp.bfloat16), w_ref[pl.ds(2 * wcp, wcp), :],
                            preferred_element_type=jnp.float32)
        return acc + b_ref[...]

    a1 = jnp.maximum(conv3x3(x, w1_ref, b1_ref), 0.0)       # conv1 + bn1 + relu
    y2 = conv3x3(a1, w2_ref, b2_ref)                         # conv2 + bn2
    o_ref[...] = jnp.maximum(y2 + x, 0.0).reshape(nb, h, wcp)  # + residual, relu


# ----------------------------- wrapper-side packing -----------------------------

def _fold_bn_into_conv(w_hwio, conv_b, gamma, beta, rmean, rvar, eps):
    """Fold eval-mode BN into the conv: conv(x, w*s) + b, with s = g/sqrt(var+eps)."""
    s = gamma / jnp.sqrt(rvar + eps)
    return w_hwio * s, (conv_b - rmean) * s + beta


def _banded_weight(w_hwio, W, WCp):
    """(3,3,Cin,Cout) -> (3*WCp, WCp) block-banded matrix for the (H, W*C) layout.

    Row index = ky*WCp + (w'*Cin + cin), col index = w*Cout + cout; block (w',w) of the
    ky slab is w_hwio[ky, w'-w+1] when |w'-w| <= 1, else zero (this also implements the
    zero 'same' padding along W).
    """
    kh, kw, cin, cout = w_hwio.shape
    WC = W * cout
    wp = np.arange(W)[:, None]
    w = np.arange(W)[None, :]
    ind = np.stack([(wp == w + kx - 1) for kx in range(kw)]).astype(np.float32)  # (3,W,W)
    B = jnp.einsum("ykio,kpw->ypiwo", w_hwio, jnp.asarray(ind))   # (3,W,Cin,W,Cout)
    B = B.reshape(kh, WC, WC)
    B = jnp.pad(B, ((0, 0), (0, WCp - WC), (0, WCp - WC)))
    return B.reshape(kh * WCp, WCp)


def _packed_bias(b, W, WCp):
    b_wc = jnp.tile(b, W)                                         # lane w*C + c -> b[c]
    return jnp.pad(b_wc, (0, WCp - b_wc.shape[0])).reshape(1, WCp)


def prepare_residual_block_params(w1_hwio, b1, w2_hwio, b2, W):
    """Build banded bf16 weights + packed f32 biases ONCE per parameter set.

    Callers must cache the result across forward calls: the (3,W,Cin,W,Cout) einsum is
    O(W^2 * C^2) and must not re-run every invocation.
    """
    C = w1_hwio.shape[-1]
    WC = W * C
    WCp = ((WC + LANE - 1) // LANE) * LANE            # lane-dense last dim
    return dict(
        B1=_banded_weight(w1_hwio, W, WCp).astype(jnp.bfloat16),
        b1=_packed_bias(b1, W, WCp).astype(jnp.float32),
        B2=_banded_weight(w2_hwio, W, WCp).astype(jnp.bfloat16),
        b2=_packed_bias(b2, W, WCp).astype(jnp.float32),
        W=W, C=C, WCp=WCp)


def _choose_nb(n, h, target_rows=256):
    """Images per grid step: fill ~target_rows MXU rows, keep >= 2 grid steps, divide N."""
    nb = max(1, min(n, target_rows // max(h, 1)))
    while nb > 1 and n // nb < 2:        # >= 2 steps -> both v7x TCs busy, pipeline works
        nb -= 1
    while n % nb:
        nb -= 1
    return nb


def residual_block(x_nhwc, params):
    """x_nhwc f32 (N,H,W,C); params from prepare_residual_block_params."""
    N, H, W, C = x_nhwc.shape
    assert W == params["W"] and C == params["C"]
    WCp = params["WCp"]
    WC = W * C
    K = 3 * WCp
    NB = _choose_nb(N, H)
    grid = (N // NB,)

    x_p = jnp.pad(x_nhwc.reshape(N, H, WC),
                  ((0, 0), (0, 0), (0, WCp - WC))).astype(jnp.bfloat16)

    # Advisory cost: true conv MACs (not the banded matmul's structural zeros).
    flops = 2 * (2 * 9 * C * C * N * H * W)
    bytes_accessed = (x_p.size * 2 + N * H * WCp * 4
                      + (params["B1"].size + params["B2"].size) * 2
                      + (params["b1"].size + params["b2"].size) * 4)

    operands = (x_p, params["B1"], params["b1"], params["B2"], params["b2"])

    def build(single_buffer_weights):
        wt_mode = pl.Buffered(1) if single_buffer_weights else None
        w_bufs = 1 if single_buffer_weights else 2
        blk = NB * H * WCp
        needed = (2 * blk * 2 + 2 * blk * 4          # x (bf16) + out (f32), double-buffered
                  + w_bufs * 2 * K * WCp * 2         # two banded bf16 weights
                  + 2 * 2 * WCp * 4                  # biases
                  + 8 * blk * 4)                     # in-kernel temporaries headroom
        vmem_limit = int(min(max(needed * 3 // 2, 8 * 2**20), 56 * 2**20))  # v7x: <=56MiB
        return pl.pallas_call(
            _residual_block_kernel,
            out_shape=jax.ShapeDtypeStruct((N, H, WCp), jnp.float32),
            grid_spec=pltpu.PrefetchScalarGridSpec(
                num_scalar_prefetch=0,
                grid=grid,
                in_specs=[
                    pl.BlockSpec((NB, H, WCp), lambda n: (n, 0, 0)),
                    pl.BlockSpec((K, WCp), lambda n: (0, 0), pipeline_mode=wt_mode),
                    pl.BlockSpec((1, WCp), lambda n: (0, 0), pipeline_mode=wt_mode),
                    pl.BlockSpec((K, WCp), lambda n: (0, 0), pipeline_mode=wt_mode),
                    pl.BlockSpec((1, WCp), lambda n: (0, 0), pipeline_mode=wt_mode),
                ],
                out_specs=pl.BlockSpec((NB, H, WCp), lambda n: (n, 0, 0)),
            ),
            compiler_params=pltpu.CompilerParams(
                dimension_semantics=("parallel",),
                vmem_limit_bytes=vmem_limit,
            ),
            cost_estimate=pl.CostEstimate(
                flops=flops, transcendentals=0, bytes_accessed=bytes_accessed),
        )

    try:
        out_p = jax.block_until_ready(build(single_buffer_weights=True)(*operands))
    except Exception:
        # Fallback if this jax version rejects Buffered(1) single-buffered residents.
        out_p = build(single_buffer_weights=False)(*operands)

    return out_p[:, :, :WC].reshape(N, H, W, C)


if __name__ == "__main__":
    key = jax.random.PRNGKey(0)
    N, C, H, W = 4, 8, 16, 16          # W*C = 128 -> fully lane-dense packing
    ks = jax.random.split(key, 13)
    eps = 1e-5

    # Input in PyTorch NCHW layout.
    x_nchw = jax.random.normal(ks[0], (N, C, H, W), jnp.float32)

    # Deterministic "module" parameters (PyTorch layouts: conv weight OIHW).
    w1_oihw = 0.1 * jax.random.normal(ks[1], (C, C, 3, 3), jnp.float32)
    cb1 = 0.1 * jax.random.normal(ks[2], (C,), jnp.float32)
    g1 = 1.0 + 0.1 * jax.random.normal(ks[3], (C,), jnp.float32)
    be1 = 0.1 * jax.random.normal(ks[4], (C,), jnp.float32)
    rm1 = 0.1 * jax.random.normal(ks[5], (C,), jnp.float32)
    rv1 = 1.0 + 0.1 * jnp.abs(jax.random.normal(ks[6], (C,), jnp.float32))

    w2_oihw = 0.1 * jax.random.normal(ks[7], (C, C, 3, 3), jnp.float32)
    cb2 = 0.1 * jax.random.normal(ks[8], (C,), jnp.float32)
    g2 = 1.0 + 0.1 * jax.random.normal(ks[9], (C,), jnp.float32)
    be2 = 0.1 * jax.random.normal(ks[10], (C,), jnp.float32)
    rm2 = 0.1 * jax.random.normal(ks[11], (C,), jnp.float32)
    rv2 = 1.0 + 0.1 * jnp.abs(jax.random.normal(ks[12], (C,), jnp.float32))

    # PyTorch OIHW -> HWIO, fold eval-mode BN (scale into weights, shift into bias).
    w1_hwio = jnp.transpose(w1_oihw, (2, 3, 1, 0))
    w2_hwio = jnp.transpose(w2_oihw, (2, 3, 1, 0))
    w1f, b1f = _fold_bn_into_conv(w1_hwio, cb1, g1, be1, rm1, rv1, eps)
    w2f, b2f = _fold_bn_into_conv(w2_hwio, cb2, g2, be2, rm2, rv2, eps)

    # Pack parameters once (re-used across forward calls).
    params = prepare_residual_block_params(w1f, b1f, w2f, b2f, W)

    # NCHW -> NHWC for the kernel, run, convert back.
    x_nhwc = jnp.transpose(x_nchw, (0, 2, 3, 1))
    out_nhwc = residual_block(x_nhwc, params)
    out_nchw = jnp.transpose(out_nhwc, (0, 3, 1, 2))
    jax.block_until_ready(out_nchw)

    # Pure-JAX f32 reference matching the PyTorch (eval-mode) forward, in NCHW.
    def conv2d(x, w, b):
        y = lax.conv_general_dilated(
            x, w, window_strides=(1, 1), padding="SAME",
            dimension_numbers=("NCHW", "OIHW", "NCHW"))
        return y + b.reshape(1, -1, 1, 1)

    def bn(x, g, be, m, v):
        m = m.reshape(1, -1, 1, 1)
        v = v.reshape(1, -1, 1, 1)
        return (x - m) / jnp.sqrt(v + eps) * g.reshape(1, -1, 1, 1) + be.reshape(1, -1, 1, 1)

    y = jax.nn.relu(bn(conv2d(x_nchw, w1_oihw, cb1), g1, be1, rm1, rv1))
    y = bn(conv2d(y, w2_oihw, cb2), g2, be2, rm2, rv2)
    y = jax.nn.relu(y + x_nchw)

    # bf16 matmul inputs (f32 accumulation): tolerance loosened vs the f32 reference.
    assert np.allclose(np.asarray(out_nchw), np.asarray(y), atol=5e-2, rtol=5e-2), \
        "Pallas ResidualBlock mismatch vs reference"
    print("KERNEL_OK")
</pallas_src>

<mosaic_0001>
module attributes {stable_mosaic.version = 11 : i64} {
  func.func @_residual_block_kernel(%arg0: i32, %arg1: memref<2x16x128xbf16, #tpu.memory_space<vmem>>, %arg2: memref<384x128xbf16, #tpu.memory_space<vmem>>, %arg3: memref<1x128xf32, #tpu.memory_space<vmem>>, %arg4: memref<384x128xbf16, #tpu.memory_space<vmem>>, %arg5: memref<1x128xf32, #tpu.memory_space<vmem>>, %arg6: memref<2x16x128xf32, #tpu.memory_space<vmem>>) attributes {dimension_semantics = [#tpu.dimension_semantics<parallel>], iteration_bounds = array<i64: 2>, scalar_prefetch = 0 : i64, scratch_operands = 0 : i64, tpu.core_type = #tpu.core_type<tc>, window_params = [{transform_indices = @transform_0, window_bounds = array<i64: 2, 16, 128>}, {pipeline_mode = #tpu.pipeline_mode<synchronous>, transform_indices = @transform_1, window_bounds = array<i64: 384, 128>}, {pipeline_mode = #tpu.pipeline_mode<synchronous>, transform_indices = @transform_2, window_bounds = array<i64: 1, 128>}, {pipeline_mode = #tpu.pipeline_mode<synchronous>, transform_indices = @transform_3, window_bounds = array<i64: 384, 128>}, {pipeline_mode = #tpu.pipeline_mode<synchronous>, transform_indices = @transform_4, window_bounds = array<i64: 1, 128>}, {transform_indices = @transform_5, window_bounds = array<i64: 2, 16, 128>}]} {
    %c0 = arith.constant 0 : index
    %c0_0 = arith.constant 0 : index
    %c0_1 = arith.constant 0 : index
    %0 = vector.load %arg1[%c0, %c0_0, %c0_1] : memref<2x16x128xbf16, #tpu.memory_space<vmem>>, vector<2x16x128xbf16>
    %1 = arith.extf %0 : vector<2x16x128xbf16> to vector<2x16x128xf32>
    %2 = vector.shape_cast %1 : vector<2x16x128xf32> to vector<32x128xf32>
    %3 = tpu.iota {dimensions = array<i32: 0>} : vector<32x128xi32>
    %c16_i32 = arith.constant 16 : i32
    %c0_i32 = arith.constant 0 : i32
    %4 = arith.cmpi eq, %c16_i32, %c0_i32 : i32
    %c1_i32 = arith.constant 1 : i32
    %5 = arith.select %4, %c1_i32, %c16_i32 : i32
    %6 = vector.broadcast %5 : i32 to vector<32x128xi32>
    %7 = arith.remsi %3, %6 : vector<32x128xi32>
    %c0_i32_2 = arith.constant 0 : i32
    %8 = vector.broadcast %c0_i32_2 : i32 to vector<32x128xi32>
    %9 = arith.cmpi ne, %7, %8 : vector<32x128xi32>
    %c0_i32_3 = arith.constant 0 : i32
    %10 = vector.broadcast %c0_i32_3 : i32 to vector<32x128xi32>
    %11 = arith.cmpi slt, %7, %10 : vector<32x128xi32>
    %c0_i32_4 = arith.constant 0 : i32
    %12 = arith.cmpi slt, %5, %c0_i32_4 : i32
    %13 = vector.broadcast %12 : i1 to vector<32x128xi1>
    %14 = vector.broadcast %13 : vector<32x128xi1> to vector<32x128xi1>
    %15 = arith.xori %11, %14 : vector<32x128xi1>
    %16 = arith.andi %15, %9 : vector<32x128xi1>
    %17 = vector.broadcast %5 : i32 to vector<32x128xi32>
    %18 = arith.addi %7, %17 : vector<32x128xi32>
    %19 = arith.select %16, %18, %7 : vector<32x128xi1>, vector<32x128xi32>
    %c0_i32_5 = arith.constant 0 : i32
    %20 = vector.broadcast %c0_i32_5 : i32 to vector<32x128xi32>
    %21 = arith.cmpi ne, %19, %20 : vector<32x128xi32>
    %c16_i32_6 = arith.constant 16 : i32
    %c0_i32_7 = arith.constant 0 : i32
    %22 = arith.cmpi eq, %c16_i32_6, %c0_i32_7 : i32
    %c1_i32_8 = arith.constant 1 : i32
    %23 = arith.select %22, %c1_i32_8, %c16_i32_6 : i32
    %24 = vector.broadcast %23 : i32 to vector<32x128xi32>
    %25 = arith.remsi %3, %24 : vector<32x128xi32>
    %c0_i32_9 = arith.constant 0 : i32
    %26 = vector.broadcast %c0_i32_9 : i32 to vector<32x128xi32>
    %27 = arith.cmpi ne, %25, %26 : vector<32x128xi32>
    %c0_i32_10 = arith.constant 0 : i32
    %28 = vector.broadcast %c0_i32_10 : i32 to vector<32x128xi32>
    %29 = arith.cmpi slt, %25, %28 : vector<32x128xi32>
    %c0_i32_11 = arith.constant 0 : i32
    %30 = arith.cmpi slt, %23, %c0_i32_11 : i32
    %31 = vector.broadcast %30 : i1 to vector<32x128xi1>
    %32 = vector.broadcast %31 : vector<32x128xi1> to vector<32x128xi1>
    %33 = arith.xori %29, %32 : vector<32x128xi1>
    %34 = arith.andi %33, %27 : vector<32x128xi1>
    %35 = vector.broadcast %23 : i32 to vector<32x128xi32>
    %36 = arith.addi %25, %35 : vector<32x128xi32>
    %37 = arith.select %34, %36, %25 : vector<32x128xi1>, vector<32x128xi32>
    %c15_i32 = arith.constant 15 : i32
    %38 = vector.broadcast %c15_i32 : i32 to vector<32x128xi32>
    %39 = arith.cmpi ne, %37, %38 : vector<32x128xi32>
    %c1_i32_12 = arith.constant 1 : i32
    %40 = tpu.dynamic_rotate %2 by %c1_i32_12 dim 0 : vector<32x128xf32>, i32 -> vector<32x128xf32>
    %cst = arith.constant 0.000000e+00 : f32
    %41 = vector.broadcast %cst : f32 to vector<32x128xf32>
    %42 = arith.select %21, %40, %41 : vector<32x128xi1>, vector<32x128xf32>
    %c31_i32 = arith.constant 31 : i32
    %43 = tpu.dynamic_rotate %2 by %c31_i32 dim 0 : vector<32x128xf32>, i32 -> vector<32x128xf32>
    %cst_13 = arith.constant 0.000000e+00 : f32
    %44 = vector.broadcast %cst_13 : f32 to vector<32x128xf32>
    %45 = arith.select %39, %43, %44 : vector<32x128xi1>, vector<32x128xf32>
    %46 = arith.truncf %42 : vector<32x128xf32> to vector<32x128xbf16>
    %c0_14 = arith.constant 0 : index
    %c0_15 = arith.constant 0 : index
    %47 = vector.load %arg2[%c0_14, %c0_15] : memref<384x128xbf16, #tpu.memory_space<vmem>>, vector<128x128xbf16>
    %cst_16 = arith.constant dense<0.000000e+00> : vector<32x128xf32>
    %48 = tpu.matmul %46, %47, %cst_16 {dimension_numbers = #tpu.dot_dimension_numbers<[1], [0], [0], [1], [0, 0, 1, 1], [], []>} : vector<32x128xbf16>, vector<128x128xbf16>, vector<32x128xf32> -> vector<32x128xf32>
    %49 = arith.truncf %2 : vector<32x128xf32> to vector<32x128xbf16>
    %c128 = arith.constant 128 : index
    %c0_17 = arith.constant 0 : index
    %50 = vector.load %arg2[%c128, %c0_17] : memref<384x128xbf16, #tpu.memory_space<vmem>>, vector<128x128xbf16>
    %cst_18 = arith.constant dense<0.000000e+00> : vector<32x128xf32>
    %51 = tpu.matmul %49, %50, %cst_18 {dimension_numbers = #tpu.dot_dimension_numbers<[1], [0], [0], [1], [0, 0, 1, 1], [], []>} : vector<32x128xbf16>, vector<128x128xbf16>, vector<32x128xf32> -> vector<32x128xf32>
    %52 = arith.addf %48, %51 : vector<32x128xf32>
    %53 = arith.truncf %45 : vector<32x128xf32> to vector<32x128xbf16>
    %c256 = arith.constant 256 : index
    %c0_19 = arith.constant 0 : index
    %54 = vector.load %arg2[%c256, %c0_19] : memref<384x128xbf16, #tpu.memory_space<vmem>>, vector<128x128xbf16>
    %cst_20 = arith.constant dense<0.000000e+00> : vector<32x128xf32>
    %55 = tpu.matmul %53, %54, %cst_20 {dimension_numbers = #tpu.dot_dimension_numbers<[1], [0], [0], [1], [0, 0, 1, 1], [], []>} : vector<32x128xbf16>, vector<128x128xbf16>, vector<32x128xf32> -> vector<32x128xf32>
    %56 = arith.addf %52, %55 : vector<32x128xf32>
    %c0_21 = arith.constant 0 : index
    %c0_22 = arith.constant 0 : index
    %57 = vector.load %arg3[%c0_21, %c0_22] : memref<1x128xf32, #tpu.memory_space<vmem>>, vector<1x128xf32>
    %58 = vector.broadcast %57 : vector<1x128xf32> to vector<32x128xf32>
    %59 = arith.addf %56, %58 : vector<32x128xf32>
    %cst_23 = arith.constant 0.000000e+00 : f32
    %60 = vector.broadcast %cst_23 : f32 to vector<32x128xf32>
    %61 = arith.maximumf %59, %60 : vector<32x128xf32>
    %c1_i32_24 = arith.constant 1 : i32
    %62 = tpu.dynamic_rotate %61 by %c1_i32_24 dim 0 : vector<32x128xf32>, i32 -> vector<32x128xf32>
    %cst_25 = arith.constant 0.000000e+00 : f32
    %63 = vector.broadcast %cst_25 : f32 to vector<32x128xf32>
    %64 = arith.select %21, %62, %63 : vector<32x128xi1>, vector<32x128xf32>
    %c31_i32_26 = arith.constant 31 : i32
    %65 = tpu.dynamic_rotate %61 by %c31_i32_26 dim 0 : vector<32x128xf32>, i32 -> vector<32x128xf32>
    %cst_27 = arith.constant 0.000000e+00 : f32
    %66 = vector.broadcast %cst_27 : f32 to vector<32x128xf32>
    %67 = arith.select %39, %65, %66 : vector<32x128xi1>, vector<32x128xf32>
    %68 = arith.truncf %64 : vector<32x128xf32> to vector<32x128xbf16>
    %c0_28 = arith.constant 0 : index
    %c0_29 = arith.constant 0 : index
    %69 = vector.load %arg4[%c0_28, %c0_29] : memref<384x128xbf16, #tpu.memory_space<vmem>>, vector<128x128xbf16>
    %cst_30 = arith.constant dense<0.000000e+00> : vector<32x128xf32>
    %70 = tpu.matmul %68, %69, %cst_30 {dimension_numbers = #tpu.dot_dimension_numbers<[1], [0], [0], [1], [0, 0, 1, 1], [], []>} : vector<32x128xbf16>, vector<128x128xbf16>, vector<32x128xf32> -> vector<32x128xf32>
    %71 = arith.truncf %61 : vector<32x128xf32> to vector<32x128xbf16>
    %c128_31 = arith.constant 128 : index
    %c0_32 = arith.constant 0 : index
    %72 = vector.load %arg4[%c128_31, %c0_32] : memref<384x128xbf16, #tpu.memory_space<vmem>>, vector<128x128xbf16>
    %cst_33 = arith.constant dense<0.000000e+00> : vector<32x128xf32>
    %73 = tpu.matmul %71, %72, %cst_33 {dimension_numbers = #tpu.dot_dimension_numbers<[1], [0], [0], [1], [0, 0, 1, 1], [], []>} : vector<32x128xbf16>, vector<128x128xbf16>, vector<32x128xf32> -> vector<32x128xf32>
    %74 = arith.addf %70, %73 : vector<32x128xf32>
    %75 = arith.truncf %67 : vector<32x128xf32> to vector<32x128xbf16>
    %c256_34 = arith.constant 256 : index
    %c0_35 = arith.constant 0 : index
    %76 = vector.load %arg4[%c256_34, %c0_35] : memref<384x128xbf16, #tpu.memory_space<vmem>>, vector<128x128xbf16>
    %cst_36 = arith.constant dense<0.000000e+00> : vector<32x128xf32>
    %77 = tpu.matmul %75, %76, %cst_36 {dimension_numbers = #tpu.dot_dimension_numbers<[1], [0], [0], [1], [0, 0, 1, 1], [], []>} : vector<32x128xbf16>, vector<128x128xbf16>, vector<32x128xf32> -> vector<32x128xf32>
    %78 = arith.addf %74, %77 : vector<32x128xf32>
    %c0_37 = arith.constant 0 : index
    %c0_38 = arith.constant 0 : index
    %79 = vector.load %arg5[%c0_37, %c0_38] : memref<1x128xf32, #tpu.memory_space<vmem>>, vector<1x128xf32>
    %80 = vector.broadcast %79 : vector<1x128xf32> to vector<32x128xf32>
    %81 = arith.addf %78, %80 : vector<32x128xf32>
    %82 = arith.addf %81, %2 : vector<32x128xf32>
    %cst_39 = arith.constant 0.000000e+00 : f32
    %83 = vector.broadcast %cst_39 : f32 to vector<32x128xf32>
    %84 = arith.maximumf %82, %83 : vector<32x128xf32>
    %85 = vector.shape_cast %84 : vector<32x128xf32> to vector<2x16x128xf32>
    %c0_40 = arith.constant 0 : index
    %c0_41 = arith.constant 0 : index
    %c0_42 = arith.constant 0 : index
    %86 = vector.load %arg6[%c0_40, %c0_41, %c0_42] : memref<2x16x128xf32, #tpu.memory_space<vmem>>, vector<2x16x128xf32>
    tpu.vector_store %arg6[%c0_40, %c0_41, %c0_42], %85 {strides = array<i32>} : memref<2x16x128xf32, #tpu.memory_space<vmem>>, vector<2x16x128xf32>,
    return
  }
  func.func @transform_0(%arg0: i32) -> (i32, i32, i32) {
    %c0_i32 = arith.constant 0 : i32
    %c0_i32_0 = arith.constant 0 : i32
    %c0_i32_1 = arith.constant 0 : i32
    return %arg0, %c0_i32, %c0_i32_0 : i32, i32, i32
  }
  func.func @transform_1(%arg0: i32) -> (i32, i32) {
    %c0_i32 = arith.constant 0 : i32
    %c0_i32_0 = arith.constant 0 : i32
    %c0_i32_1 = arith.constant 0 : i32
    return %c0_i32, %c0_i32_0 : i32, i32
  }
  func.func @transform_2(%arg0: i32) -> (i32, i32) {
    %c0_i32 = arith.constant 0 : i32
    %c0_i32_0 = arith.constant 0 : i32
    %c0_i32_1 = arith.constant 0 : i32
    return %c0_i32, %c0_i32_0 : i32, i32
  }
  func.func @transform_3(%arg0: i32) -> (i32, i32) {
    %c0_i32 = arith.constant 0 : i32
    %c0_i32_0 = arith.constant 0 : i32
    %c0_i32_1 = arith.constant 0 : i32
    return %c0_i32, %c0_i32_0 : i32, i32
  }
  func.func @transform_4(%arg0: i32) -> (i32, i32) {
    %c0_i32 = arith.constant 0 : i32
    %c0_i32_0 = arith.constant 0 : i32
    %c0_i32_1 = arith.constant 0 : i32
    return %c0_i32, %c0_i32_0 : i32, i32
  }
  func.func @transform_5(%arg0: i32) -> (i32, i32, i32) {
    %c0_i32 = arith.constant 0 : i32
    %c0_i32_0 = arith.constant 0 : i32
    %c0_i32_1 = arith.constant 0 : i32
    return %arg0, %c0_i32, %c0_i32_0 : i32, i32, i32
  }
}

module attributes {stable_mosaic.version = 11 : i64} {
  func.func @_residual_block_kernel(%arg0: i32, %arg1: memref<2x16x128xbf16, #tpu.memory_space<vmem>>, %arg2: memref<384x128xbf16, #tpu.memory_space<vmem>>, %arg3: memref<1x128xf32, #tpu.memory_space<vmem>>, %arg4: memref<384x128xbf16, #tpu.memory_space<vmem>>, %arg5: memref<1x128xf32, #tpu.memory_space<vmem>>, %arg6: memref<2x16x128xf32, #tpu.memory_space<vmem>>) attributes {dimension_semantics = [#tpu.dimension_semantics<parallel>], iteration_bounds = array<i64: 2>, scalar_prefetch = 0 : i64, scratch_operands = 0 : i64, tpu.core_type = #tpu.core_type<tc>, window_params = [{transform_indices = @transform_0, window_bounds = array<i64: 2, 16, 128>}, {pipeline_mode = #tpu.pipeline_mode<synchronous>, transform_indices = @transform_1, window_bounds = array<i64: 384, 128>}, {pipeline_mode = #tpu.pipeline_mode<synchronous>, transform_indices = @transform_2, window_bounds = array<i64: 1, 128>}, {pipeline_mode = #tpu.pipeline_mode<synchronous>, transform_indices = @transform_3, window_bounds = array<i64: 384, 128>}, {pipeline_mode = #tpu.pipeline_mode<synchronous>, transform_indices = @transform_4, window_bounds = array<i64: 1, 128>}, {transform_indices = @transform_5, window_bounds = array<i64: 2, 16, 128>}]} {
    %c0 = arith.constant 0 : index
    %c0_0 = arith.constant 0 : index
    %c0_1 = arith.constant 0 : index
    %0 = vector.load %arg1[%c0, %c0_0, %c0_1] : memref<2x16x128xbf16, #tpu.memory_space<vmem>>, vector<2x16x128xbf16>
    %1 = arith.extf %0 : vector<2x16x128xbf16> to vector<2x16x128xf32>
    %2 = vector.shape_cast %1 : vector<2x16x128xf32> to vector<32x128xf32>
    %3 = tpu.iota {dimensions = array<i32: 0>} : vector<32x128xi32>
    %c16_i32 = arith.constant 16 : i32
    %c0_i32 = arith.constant 0 : i32
    %4 = arith.cmpi eq, %c16_i32, %c0_i32 : i32
    %c1_i32 = arith.constant 1 : i32
    %5 = arith.select %4, %c1_i32, %c16_i32 : i32
    %6 = vector.broadcast %5 : i32 to vector<32x128xi32>
    %7 = arith.remsi %3, %6 : vector<32x128xi32>
    %c0_i32_2 = arith.constant 0 : i32
    %8 = vector.broadcast %c0_i32_2 : i32 to vector<32x128xi32>
    %9 = arith.cmpi ne, %7, %8 : vector<32x128xi32>
    %c0_i32_3 = arith.constant 0 : i32
    %10 = vector.broadcast %c0_i32_3 : i32 to vector<32x128xi32>
    %11 = arith.cmpi slt, %7, %10 : vector<32x128xi32>
    %c0_i32_4 = arith.constant 0 : i32
    %12 = arith.cmpi slt, %5, %c0_i32_4 : i32
    %13 = vector.broadcast %12 : i1 to vector<32x128xi1>
    %14 = vector.broadcast %13 : vector<32x128xi1> to vector<32x128xi1>
    %15 = arith.xori %11, %14 : vector<32x128xi1>
    %16 = arith.andi %15, %9 : vector<32x128xi1>
    %17 = vector.broadcast %5 : i32 to vector<32x128xi32>
    %18 = arith.addi %7, %17 : vector<32x128xi32>
    %19 = arith.select %16, %18, %7 : vector<32x128xi1>, vector<32x128xi32>
    %c0_i32_5 = arith.constant 0 : i32
    %20 = vector.broadcast %c0_i32_5 : i32 to vector<32x128xi32>
    %21 = arith.cmpi ne, %19, %20 : vector<32x128xi32>
    %c16_i32_6 = arith.constant 16 : i32
    %c0_i32_7 = arith.constant 0 : i32
    %22 = arith.cmpi eq, %c16_i32_6, %c0_i32_7 : i32
    %c1_i32_8 = arith.constant 1 : i32
    %23 = arith.select %22, %c1_i32_8, %c16_i32_6 : i32
    %24 = vector.broadcast %23 : i32 to vector<32x128xi32>
    %25 = arith.remsi %3, %24 : vector<32x128xi32>
    %c0_i32_9 = arith.constant 0 : i32
    %26 = vector.broadcast %c0_i32_9 : i32 to vector<32x128xi32>
    %27 = arith.cmpi ne, %25, %26 : vector<32x128xi32>
    %c0_i32_10 = arith.constant 0 : i32
    %28 = vector.broadcast %c0_i32_10 : i32 to vector<32x128xi32>
    %29 = arith.cmpi slt, %25, %28 : vector<32x128xi32>
    %c0_i32_11 = arith.constant 0 : i32
    %30 = arith.cmpi slt, %23, %c0_i32_11 : i32
    %31 = vector.broadcast %30 : i1 to vector<32x128xi1>
    %32 = vector.broadcast %31 : vector<32x128xi1> to vector<32x128xi1>
    %33 = arith.xori %29, %32 : vector<32x128xi1>
    %34 = arith.andi %33, %27 : vector<32x128xi1>
    %35 = vector.broadcast %23 : i32 to vector<32x128xi32>
    %36 = arith.addi %25, %35 : vector<32x128xi32>
    %37 = arith.select %34, %36, %25 : vector<32x128xi1>, vector<32x128xi32>
    %c15_i32 = arith.constant 15 : i32
    %38 = vector.broadcast %c15_i32 : i32 to vector<32x128xi32>
    %39 = arith.cmpi ne, %37, %38 : vector<32x128xi32>
    %c1_i32_12 = arith.constant 1 : i32
    %40 = tpu.dynamic_rotate %2 by %c1_i32_12 dim 0 : vector<32x128xf32>, i32 -> vector<32x128xf32>
    %cst = arith.constant 0.000000e+00 : f32
    %41 = vector.broadcast %cst : f32 to vector<32x128xf32>
    %42 = arith.select %21, %40, %41 : vector<32x128xi1>, vector<32x128xf32>
    %c31_i32 = arith.constant 31 : i32
    %43 = tpu.dynamic_rotate %2 by %c31_i32 dim 0 : vector<32x128xf32>, i32 -> vector<32x128xf32>
    %cst_13 = arith.constant 0.000000e+00 : f32
    %44 = vector.broadcast %cst_13 : f32 to vector<32x128xf32>
    %45 = arith.select %39, %43, %44 : vector<32x128xi1>, vector<32x128xf32>
    %46 = arith.truncf %42 : vector<32x128xf32> to vector<32x128xbf16>
    %c0_14 = arith.constant 0 : index
    %c0_15 = arith.constant 0 : index
    %47 = vector.load %arg2[%c0_14, %c0_15] : memref<384x128xbf16, #tpu.memory_space<vmem>>, vector<128x128xbf16>
    %cst_16 = arith.constant dense<0.000000e+00> : vector<32x128xf32>
    %48 = tpu.matmul %46, %47, %cst_16 {dimension_numbers = #tpu.dot_dimension_numbers<[1], [0], [0], [1], [0, 0, 1, 1], [], []>} : vector<32x128xbf16>, vector<128x128xbf16>, vector<32x128xf32> -> vector<32x128xf32>
    %49 = arith.truncf %2 : vector<32x128xf32> to vector<32x128xbf16>
    %c128 = arith.constant 128 : index
    %c0_17 = arith.constant 0 : index
    %50 = vector.load %arg2[%c128, %c0_17] : memref<384x128xbf16, #tpu.memory_space<vmem>>, vector<128x128xbf16>
    %cst_18 = arith.constant dense<0.000000e+00> : vector<32x128xf32>
    %51 = tpu.matmul %49, %50, %cst_18 {dimension_numbers = #tpu.dot_dimension_numbers<[1], [0], [0], [1], [0, 0, 1, 1], [], []>} : vector<32x128xbf16>, vector<128x128xbf16>, vector<32x128xf32> -> vector<32x128xf32>
    %52 = arith.addf %48, %51 : vector<32x128xf32>
    %53 = arith.truncf %45 : vector<32x128xf32> to vector<32x128xbf16>
    %c256 = arith.constant 256 : index
    %c0_19 = arith.constant 0 : index
    %54 = vector.load %arg2[%c256, %c0_19] : memref<384x128xbf16, #tpu.memory_space<vmem>>, vector<128x128xbf16>
    %cst_20 = arith.constant dense<0.000000e+00> : vector<32x128xf32>
    %55 = tpu.matmul %53, %54, %cst_20 {dimension_numbers = #tpu.dot_dimension_numbers<[1], [0], [0], [1], [0, 0, 1, 1], [], []>} : vector<32x128xbf16>, vector<128x128xbf16>, vector<32x128xf32> -> vector<32x128xf32>
    %56 = arith.addf %52, %55 : vector<32x128xf32>
    %c0_21 = arith.constant 0 : index
    %c0_22 = arith.constant 0 : index
    %57 = vector.load %arg3[%c0_21, %c0_22] : memref<1x128xf32, #tpu.memory_space<vmem>>, vector<1x128xf32>
    %58 = vector.broadcast %57 : vector<1x128xf32> to vector<32x128xf32>
    %59 = arith.addf %56, %58 : vector<32x128xf32>
    %cst_23 = arith.constant 0.000000e+00 : f32
    %60 = vector.broadcast %cst_23 : f32 to vector<32x128xf32>
    %61 = arith.maximumf %59, %60 : vector<32x128xf32>
    %c1_i32_24 = arith.constant 1 : i32
    %62 = tpu.dynamic_rotate %61 by %c1_i32_24 dim 0 : vector<32x128xf32>, i32 -> vector<32x128xf32>
    %cst_25 = arith.constant 0.000000e+00 : f32
    %63 = vector.broadcast %cst_25 : f32 to vector<32x128xf32>
    %64 = arith.select %21, %62, %63 : vector<32x128xi1>, vector<32x128xf32>
    %c31_i32_26 = arith.constant 31 : i32
    %65 = tpu.dynamic_rotate %61 by %c31_i32_26 dim 0 : vector<32x128xf32>, i32 -> vector<32x128xf32>
    %cst_27 = arith.constant 0.000000e+00 : f32
    %66 = vector.broadcast %cst_27 : f32 to vector<32x128xf32>
    %67 = arith.select %39, %65, %66 : vector<32x128xi1>, vector<32x128xf32>
    %68 = arith.truncf %64 : vector<32x128xf32> to vector<32x128xbf16>
    %c0_28 = arith.constant 0 : index
    %c0_29 = arith.constant 0 : index
    %69 = vector.load %arg4[%c0_28, %c0_29] : memref<384x128xbf16, #tpu.memory_space<vmem>>, vector<128x128xbf16>
    %cst_30 = arith.constant dense<0.000000e+00> : vector<32x128xf32>
    %70 = tpu.matmul %68, %69, %cst_30 {dimension_numbers = #tpu.dot_dimension_numbers<[1], [0], [0], [1], [0, 0, 1, 1], [], []>} : vector<32x128xbf16>, vector<128x128xbf16>, vector<32x128xf32> -> vector<32x128xf32>
    %71 = arith.truncf %61 : vector<32x128xf32> to vector<32x128xbf16>
    %c128_31 = arith.constant 128 : index
    %c0_32 = arith.constant 0 : index
    %72 = vector.load %arg4[%c128_31, %c0_32] : memref<384x128xbf16, #tpu.memory_space<vmem>>, vector<128x128xbf16>
    %cst_33 = arith.constant dense<0.000000e+00> : vector<32x128xf32>
    %73 = tpu.matmul %71, %72, %cst_33 {dimension_numbers = #tpu.dot_dimension_numbers<[1], [0], [0], [1], [0, 0, 1, 1], [], []>} : vector<32x128xbf16>, vector<128x128xbf16>, vector<32x128xf32> -> vector<32x128xf32>
    %74 = arith.addf %70, %73 : vector<32x128xf32>
    %75 = arith.truncf %67 : vector<32x128xf32> to vector<32x128xbf16>
    %c256_34 = arith.constant 256 : index
    %c0_35 = arith.constant 0 : index
    %76 = vector.load %arg4[%c256_34, %c0_35] : memref<384x128xbf16, #tpu.memory_space<vmem>>, vector<128x128xbf16>
    %cst_36 = arith.constant dense<0.000000e+00> : vector<32x128xf32>
    %77 = tpu.matmul %75, %76, %cst_36 {dimension_numbers = #tpu.dot_dimension_numbers<[1], [0], [0], [1], [0, 0, 1, 1], [], []>} : vector<32x128xbf16>, vector<128x128xbf16>, vector<32x128xf32> -> vector<32x128xf32>
    %78 = arith.addf %74, %77 : vector<32x128xf32>
    %c0_37 = arith.constant 0 : index
    %c0_38 = arith.constant 0 : index
    %79 = vector.load %arg5[%c0_37, %c0_38] : memref<1x128xf32, #tpu.memory_space<vmem>>, vector<1x128xf32>
    %80 = vector.broadcast %79 : vector<1x128xf32> to vector<32x128xf32>
    %81 = arith.addf %78, %80 : vector<32x128xf32>
    %82 = arith.addf %81, %2 : vector<32x128xf32>
    %cst_39 = arith.constant 0.000000e+00 : f32
    %83 = vector.broadcast %cst_39 : f32 to vector<32x128xf32>
    %84 = arith.maximumf %82, %83 : vector<32x128xf32>
    %85 = vector.shape_cast %84 : vector<32x128xf32> to vector<2x16x128xf32>
    %c0_40 = arith.constant 0 : index
    %c0_41 = arith.constant 0 : index
    %c0_42 = arith.constant 0 : index
    %86 = vector.load %arg6[%c0_40, %c0_41, %c0_42] : memref<2x16x128xf32, #tpu.memory_space<vmem>>, vector<2x16x128xf32>
    tpu.vector_store %arg6[%c0_40, %c0_41, %c0_42], %85 {strides = array<i32>} : memref<2x16x128xf32, #tpu.memory_space<vmem>>, vector<2x16x128xf32>,
    return
  }
  func.func @transform_0(%arg0: i32) -> (i32, i32, i32) {
    %c0_i32 = arith.constant 0 : i32
    %c0_i32_0 = arith.constant 0 : i32
    %c0_i32_1 = arith.constant 0 : i32
    return %arg0, %c0_i32, %c0_i32_0 : i32, i32, i32
  }
  func.func @transform_1(%arg0: i32) -> (i32, i32) {
    %c0_i32 = arith.constant 0 : i32
    %c0_i32_0 = arith.constant 0 : i32
    %c0_i32_1 = arith.constant 0 : i32
    return %c0_i32, %c0_i32_0 : i32, i32
  }
  func.func @transform_2(%arg0: i32) -> (i32, i32) {
    %c0_i32 = arith.constant 0 : i32
    %c0_i32_0 = arith.constant 0 : i32
    %c0_i32_1 = arith.constant 0 : i32
    return %c0_i32, %c0_i32_0 : i32, i32
  }
  func.func @transform_3(%arg0: i32) -> (i32, i32) {
    %c0_i32 = arith.constant 0 : i32
    %c0_i32_0 = arith.constant 0 : i32
    %c0_i32_1 = arith.constant 0 : i32
    return %c0_i32, %c0_i32_0 : i32, i32
  }
  func.func @transform_4(%arg0: i32) -> (i32, i32) {
    %c0_i32 = arith.constant 0 : i32
    %c0_i32_0 = arith.constant 0 : i32
    %c0_i32_1 = arith.constant 0 : i32
    return %c0_i32, %c0_i32_0 : i32, i32
  }
  func.func @transform_5(%arg0: i32) -> (i32, i32, i32) {
    %c0_i32 = arith.constant 0 : i32
    %c0_i32_0 = arith.constant 0 : i32
    %c0_i32_1 = arith.constant 0 : i32
    return %arg0, %c0_i32, %c0_i32_0 : i32, i32, i32
  }
}

</mosaic_0001>

<llo_original>
// kernel: tpu_custom_call.1
$region0: #{tpu_custom_call.1}
  #allocation0 [shape = 'u32[]', space=smem, size = 0x4, offset = 0x4, fixed_abs, tag = 'smem constant byte address 0x4 - core index']
  #allocation1 [shape = 'u32[72,128]{1,0:T(1,128)}', space=vmem, size = 0x9000, scoped, tag = 'internal scratch']
  %s0 = inlined_call_operand.hbm [shape: bf16[4,16,128], index: 0, kind: input, shape index: {}]
  %s1 = inlined_call_operand.hbm [shape: bf16[384,128], index: 1, kind: input, shape index: {}]
  %s2 = inlined_call_operand.vmem [shape: f32[1,128], index: 2, kind: input, shape index: {}]
  %s3 = inlined_call_operand.hbm [shape: bf16[384,128], index: 3, kind: input, shape index: {}]
  %s4 = inlined_call_operand.vmem [shape: f32[1,128], index: 4, kind: input, shape index: {}]
  %s5 = inlined_call_operand.hbm [shape: f32[4,16,128], index: 5, kind: output, shape index: {}]
  %s6 = sld [smem:[#allocation0]]
  $region65: #{tpu_custom_call.1} parent=0
    _
  %s8 = ssub.s32 1, %s6
  %s9 = scalar_select 0, %s8, %s6
  $region1: #{tpu_custom_call.1} parent=0
    #allocation2 [shape = 'u8[16384]{0}', space=vmem, size = 0x4000, scoped, tag = 'input window, operand 0']
    #allocation3 [shape = 's32[2]{0}', space=sflag, size = 0x8, scoped, tag = 'scoped memory for tpu_custom_call.1']
    #allocation4 [shape = 's32[2]{0}', space=sflag, size = 0x8, scoped, tag = 'scoped memory for tpu_custom_call.1']
    #allocation5 [shape = 'u8[98304]{0}', space=vmem, size = 0x18000, scoped, tag = 'input window, operand 1, single buffered']
    #allocation6 [shape = 's32[1]{0}', space=sflag, size = 0x4, scoped, tag = 'scoped memory for tpu_custom_call.1']
    #allocation7 [shape = 'u8[98304]{0}', space=vmem, size = 0x18000, scoped, tag = 'input window, operand 3, single buffered']
    #allocation8 [shape = 'u8[32768]{0}', space=vmem, size = 0x8000, scoped, tag = 'output window, operand 0']
    %10 = vsyncpa [#allocation3], 0
    %s11 = scalar_lea.sflag [#allocation3], 1
    %12 = vsyncpa %s11, 0
    %13 = vsyncpa [#allocation6], 0
    %14 = vsyncpa [#allocation4], 0
    %s15 = scalar_lea.sflag [#allocation4], 1
    %16 = vsyncpa %s15, 0
    loop: start=0, step=1, limit=4
    $region2: #{tpu_custom_call.1} parent=1 // loop_pre_header
      _
    $region3: #{tpu_custom_call.1} parent=1 // loop_header
      %s18 = sphi 0, %s22
      %p19 = scmp.ge.s32.totalorder %s18, 4
      %s28 = sphi 0, %s30
      %s31 = sphi 0, %s28
      %s32 = sphi 0, %s31
      %s48 = sphi 0, %s32
      %s52 = sphi 0, %s52
      %s54 = sphi 0, %s52
      %s55 = sphi 0, %s54
      %s69 = sphi 0, %s55
      %s73 = sphi 0, %s73
      %s75 = sphi 0, %s73
      %s76 = sphi 0, %s75
      %s90 = sphi 0, %s76
      %s94 = sphi 0, %s94
      %s96 = sphi 0, %s94
      %s97 = sphi 0, %s96
      %s111 = sphi 0, %s97
      %s115 = sphi 0, %s115
      %s117 = sphi 0, %s115
      %s118 = sphi 0, %s117
      %s132 = sphi 0, %s118
      %s138 = sphi 0, %s140
      %s141 = sphi 0, %s138
      %s142 = sphi 0, %s141
      %s158 = sphi 0, %s142
    $region4: #{tpu_custom_call.1} parent=1 // loop_header_branch
      %21 = sbr.rel (%p19) target = $region8
    $region5: #{tpu_custom_call.1} parent=1 // loop_body
      %s23 = ssub.s32 %s18, 1
      %s24 = ssub.s32 %s18, 2
      %s25 = sadd.s32 %s18, 1
      %s26 = ssub.s32 %s18, %s25
      %p27 = scmp.eq.s32.totalorder %s26, 0
      %s29 = sadd.s32 %s28, 1
      %s30 = scalar_select %p27, %s28, %s29
      %p33 = pneg %p27
      %p34 = scmp.eq.s32.totalorder %s18, 1
      %p35 = por %p33, %p34
      %p36 = scmp.ne.s32.totalorder %s28, %s31
      %p37 = scmp.eq.s32.totalorder %s18, 0
      %p38 = por %p36, %p37
      %p39 = scmp.ne.s32.totalorder %s28, %s31
      %p40 = scmp.eq.s32.totalorder %s23, 1
      %p41 = por %p39, %p40
      %p42 = scmp.ne.s32.totalorder %s31, %s32
      %p43 = scmp.eq.s32.totalorder %s23, 0
      %p44 = por %p42, %p43
      %p45 = scmp.ne.s32.totalorder %s31, %s32
      %p46 = scmp.eq.s32.totalorder %s24, 1
      %p47 = por %p45, %p46
      %p49 = scmp.ne.s32.totalorder %s32, %s48
      %p50 = scmp.eq.s32.totalorder %s24, 0
      %p51 = por %p49, %p50
      %s53 = sadd.s32 %s52, 1
      %p56 = scmp.eq.s32.totalorder %s18, 1
      %p57 = scmp.ne.s32.totalorder %s52, %s54
      %p58 = scmp.eq.s32.totalorder %s18, 0
      %p59 = por %p57, %p58
      %p60 = scmp.ne.s32.totalorder %s52, %s54
      %p61 = scmp.eq.s32.totalorder %s23, 1
      %p62 = por %p60, %p61
      %p63 = scmp.ne.s32.totalorder %s54, %s55
      %p64 = scmp.eq.s32.totalorder %s23, 0
      %p65 = por %p63, %p64
      %p66 = scmp.ne.s32.totalorder %s54, %s55
      %p67 = scmp.eq.s32.totalorder %s24, 1
      %p68 = por %p66, %p67
      %p70 = scmp.ne.s32.totalorder %s55, %s69
      %p71 = scmp.eq.s32.totalorder %s24, 0
      %p72 = por %p70, %p71
      %s74 = sadd.s32 %s73, 1
      %p77 = scmp.eq.s32.totalorder %s18, 1
      %p78 = scmp.ne.s32.totalorder %s73, %s75
      %p79 = scmp.eq.s32.totalorder %s18, 0
      %p80 = por %p78, %p79
      %p81 = scmp.ne.s32.totalorder %s73, %s75
      %p82 = scmp.eq.s32.totalorder %s23, 1
      %p83 = por %p81, %p82
      %p84 = scmp.ne.s32.totalorder %s75, %s76
      %p85 = scmp.eq.s32.totalorder %s23, 0
      %p86 = por %p84, %p85
      %p87 = scmp.ne.s32.totalorder %s75, %s76
      %p88 = scmp.eq.s32.totalorder %s24, 1
      %p89 = por %p87, %p88
      %p91 = scmp.ne.s32.totalorder %s76, %s90
      %p92 = scmp.eq.s32.totalorder %s24, 0
      %p93 = por %p91, %p92
      %s95 = sadd.s32 %s94, 1
      %p98 = scmp.eq.s32.totalorder %s18, 1
      %p99 = scmp.ne.s32.totalorder %s94, %s96
      %p100 = scmp.eq.s32.totalorder %s18, 0
      %p101 = por %p99, %p100
      %p102 = scmp.ne.s32.totalorder %s94, %s96
      %p103 = scmp.eq.s32.totalorder %s23, 1
      %p104 = por %p102, %p103
      %p105 = scmp.ne.s32.totalorder %s96, %s97
      %p106 = scmp.eq.s32.totalorder %s23, 0
      %p107 = por %p105, %p106
      %p108 = scmp.ne.s32.totalorder %s96, %s97
      %p109 = scmp.eq.s32.totalorder %s24, 1
      %p110 = por %p108, %p109
      %p112 = scmp.ne.s32.totalorder %s97, %s111
      %p113 = scmp.eq.s32.totalorder %s24, 0
      %p114 = por %p112, %p113
      %s116 = sadd.s32 %s115, 1
      %p119 = scmp.eq.s32.totalorder %s18, 1
      %p120 = scmp.ne.s32.totalorder %s115, %s117
      %p121 = scmp.eq.s32.totalorder %s18, 0
      %p122 = por %p120, %p121
      %p123 = scmp.ne.s32.totalorder %s115, %s117
      %p124 = scmp.eq.s32.totalorder %s23, 1
      %p125 = por %p123, %p124
      %p126 = scmp.ne.s32.totalorder %s117, %s118
      %p127 = scmp.eq.s32.totalorder %s23, 0
      %p128 = por %p126, %p127
      %p129 = scmp.ne.s32.totalorder %s117, %s118
      %p130 = scmp.eq.s32.totalorder %s24, 1
      %p131 = por %p129, %p130
      %p133 = scmp.ne.s32.totalorder %s118, %s132
      %p134 = scmp.eq.s32.totalorder %s24, 0
      %p135 = por %p133, %p134
      %s136 = ssub.s32 %s18, %s25
      %p137 = scmp.eq.s32.totalorder %s136, 0
      %s139 = sadd.s32 %s138, 1
      %s140 = scalar_select %p137, %s138, %s139
      %p143 = pneg %p137
      %p144 = scmp.eq.s32.totalorder %s18, 1
      %p145 = por %p143, %p144
      %p146 = scmp.ne.s32.totalorder %s138, %s141
      %p147 = scmp.eq.s32.totalorder %s18, 0
      %p148 = por %p146, %p147
      %p149 = scmp.ne.s32.totalorder %s138, %s141
      %p150 = scmp.eq.s32.totalorder %s23, 1
      %p151 = por %p149, %p150
      %p152 = scmp.ne.s32.totalorder %s141, %s142
      %p153 = scmp.eq.s32.totalorder %s23, 0
      %p154 = por %p152, %p153
      %p155 = scmp.ne.s32.totalorder %s141, %s142
      %p156 = scmp.eq.s32.totalorder %s24, 1
      %p157 = por %p155, %p156
      %p159 = scmp.ne.s32.totalorder %s142, %s158
      %p160 = scmp.eq.s32.totalorder %s24, 0
      %p161 = por %p159, %p160
      %p162 = scmp.le.s32.totalorder 1, %s18
      %p163 = scmp.lt.s32.totalorder %s18, 3
      %p164 = pnand %p162, %p163
      %p165 = pneg %p164
      // Predicated region
      $region9: #{tpu_custom_call.1} parent=5 // pred_check
        _
      $region10: #{tpu_custom_call.1} parent=5 // pred_check_branch
        %167 = sbr.rel (%p164) target = $region12
      $region11: #{tpu_custom_call.1} parent=5 // pred_region
        %s168 = ssub.s32 %s18, 1
        // Predicated region
        $region13: #{tpu_custom_call.1} parent=11 // pred_check
          %p169 = pneg %p65
        $region14: #{tpu_custom_call.1} parent=11 // pred_check_branch
          %171 = sbr.rel (%p169) target = $region16
        $region15: #{tpu_custom_call.1} parent=11 // pred_region
          %173 = vsyncadd [#allocation6], 0
          %s174 = sshll.u32 %s1, 4
          %s175 = int_to_ptr.hbm [resolvable:$true] %s174
          %s176 = sshll.u32 [#allocation5], 4
          %s177 = int_to_ptr.vmem [resolvable:$true] %s176
          %182 = dma.hbm_to_vmem [thread:$0]  %s175, 3072, %s177, [#allocation6], 64, 64, 4
        $region16: #{tpu_custom_call.1} parent=11 // pred_fallthru
          _
        // Predicated region
        $region17: #{tpu_custom_call.1} parent=11 // pred_check
          %p183 = pneg %p86
        $region18: #{tpu_custom_call.1} parent=11 // pred_check_branch
          %185 = sbr.rel (%p183) target = $region20
        $region19: #{tpu_custom_call.1} parent=11 // pred_region
          _
        $region20: #{tpu_custom_call.1} parent=11 // pred_fallthru
          _
        // Predicated region
        $region21: #{tpu_custom_call.1} parent=11 // pred_check
          %p186 = pneg %p107
        $region22: #{tpu_custom_call.1} parent=11 // pred_check_branch
          %188 = sbr.rel (%p186) target = $region24
        $region23: #{tpu_custom_call.1} parent=11 // pred_region
          %190 = vsyncadd [#allocation6], 0
          %s191 = sshll.u32 %s3, 4
          %s192 = int_to_ptr.hbm [resolvable:$true] %s191
          %s193 = sshll.u32 [#allocation7], 4
          %s194 = int_to_ptr.vmem [resolvable:$true] %s193
          %199 = dma.hbm_to_vmem [thread:$0]  %s192, 3072, %s194, [#allocation6], 64, 64, 4
        $region24: #{tpu_custom_call.1} parent=11 // pred_fallthru
          _
        // Predicated region
        $region25: #{tpu_custom_call.1} parent=11 // pred_check
          %p200 = pneg %p128
        $region26: #{tpu_custom_call.1} parent=11 // pred_check_branch
          %202 = sbr.rel (%p200) target = $region28
        $region27: #{tpu_custom_call.1} parent=11 // pred_region
          _
        $region28: #{tpu_custom_call.1} parent=11 // pred_fallthru
          _
      $region12: #{tpu_custom_call.1} parent=5 // pred_fallthru
        _
      %p203 = scmp.lt.s32.totalorder %s18, 2
      // Predicated region
      $region29: #{tpu_custom_call.1} parent=5 // pred_check
        %p204 = pneg %p203
      $region30: #{tpu_custom_call.1} parent=5 // pred_check_branch
        %206 = sbr.rel (%p204) target = $region32
      $region31: #{tpu_custom_call.1} parent=5 // pred_region
        // Predicated region
        $region33: #{tpu_custom_call.1} parent=31 // pred_check
          %p207 = pneg %p38
        $region34: #{tpu_custom_call.1} parent=31 // pred_check_branch
          %209 = sbr.rel (%p207) target = $region36
        $region35: #{tpu_custom_call.1} parent=31 // pred_region
          %s210 = sand.u32 %s28, 1
          %s211 = scalar_lea.sflag [#allocation3], %s210
          %s212 = sand.u32 %s28, 1
          %s213 = smul.addr %s212, 16
          %s214 = scalar_lea.vmem [#allocation2], %s213
          %s215 = smul.u32 2, %s18
          %217 = vsyncadd %s211, 0
          %s218 = smul.addr %s215, 2
          %s219 = smul.addr %s218, 4
          %s220 = scalar_lea.hbm %s0, %s219
          %s221 = sshll.u32 %s220, 4
          %s222 = int_to_ptr.hbm [resolvable:$true] %s221
          %s223 = sshll.u32 %s214, 4
          %s224 = int_to_ptr.vmem [resolvable:$true] %s223
          %229 = dma.hbm_to_vmem [thread:$0]  %s222, 256, %s224, %s211, 64, 64, 4
        $region36: #{tpu_custom_call.1} parent=31 // pred_fallthru
          _
      $region32: #{tpu_custom_call.1} parent=5 // pred_fallthru
        _
      %p230 = scmp.le.s32.totalorder 1, %s18
      %p231 = scmp.lt.s32.totalorder %s18, 3
      %p232 = pnand %p230, %p231
      %p233 = pneg %p232
      // Predicated region
      $region37: #{tpu_custom_call.1} parent=5 // pred_check
        _
      $region38: #{tpu_custom_call.1} parent=5 // pred_check_branch
        %235 = sbr.rel (%p232) target = $region40
      $region39: #{tpu_custom_call.1} parent=5 // pred_region
        %s236 = ssub.s32 %s18, 1
        %s237 = sand.u32 %s31, 1
        %s238 = scalar_lea.sflag [#allocation3], %s237
        %s239 = sand.u32 %s31, 1
        %s240 = smul.addr %s239, 16
        %s241 = scalar_lea.vmem [#allocation2], %s240
        // Predicated region
        $region41: #{tpu_custom_call.1} parent=39 // pred_check
          %p242 = pneg %p44
        $region42: #{tpu_custom_call.1} parent=39 // pred_check_branch
          %244 = sbr.rel (%p242) target = $region44
        $region43: #{tpu_custom_call.1} parent=39 // pred_region
          %246 = dma.done %s238, 256
        $region44: #{tpu_custom_call.1} parent=39 // pred_fallthru
          _
        // Predicated region
        $region45: #{tpu_custom_call.1} parent=39 // pred_check
          %p247 = pneg %p65
        $region46: #{tpu_custom_call.1} parent=39 // pred_check_branch
          %249 = sbr.rel (%p247) target = $region48
        $region47: #{tpu_custom_call.1} parent=39 // pred_region
          %251 = dma.done [#allocation6], 3072
        $region48: #{tpu_custom_call.1} parent=39 // pred_fallthru
          _
        // Predicated region
        $region49: #{tpu_custom_call.1} parent=39 // pred_check
          %p252 = pneg %p107
        $region50: #{tpu_custom_call.1} parent=39 // pred_check_branch
          %254 = sbr.rel (%p252) target = $region52
        $region51: #{tpu_custom_call.1} parent=39 // pred_region
          %256 = dma.done [#allocation6], 3072
        $region52: #{tpu_custom_call.1} parent=39 // pred_fallthru
          _
        %s257 = sand.u32 %s31, 1
        %s258 = scalar_lea.sflag [#allocation3], %s257
        %s259 = sand.u32 %s31, 1
        %s260 = smul.addr %s259, 16
        %s261 = scalar_lea.vmem [#allocation2], %s260
        %p262 = pneg %p44
        %p263 = pneg %p41
        %p264 = pneg %p65
        %p265 = pneg %p62
        %p266 = pneg %p86
        %p267 = pneg %p83
        %p268 = pneg %p107
        %p269 = pneg %p104
        %p270 = pneg %p128
        %p271 = pneg %p125
        %p272 = pneg %p154
        %p273 = pneg %p151
        %s274 = sand.u32 %s141, 1
        %s275 = scalar_lea.sflag [#allocation4], %s274
        %s276 = sand.u32 %s141, 1
        %s277 = smul.addr %s276, 32
        %s278 = scalar_lea.vmem [#allocation8], %s277
        %s279 = smul.u32 2, %s23
        %s280 = smul.u32 2, %s23
        %v281 = vld [vmem:[%s241] sm:$0xf]
        %v282 = vld [vmem:[%s241 + $0x4] sm:$0xf]
        %v283 = vld [vmem:[%s241 + $0x8] sm:$0xf]
        %v284 = vld [vmem:[%s241 + $0xc] sm:$0xf]
        %v285 = vunpack.c.l.bf16 %v281
        %v286 = vunpack.c.l.bf16 %v282
        %v287 = vunpack.c.l.bf16 %v283
        %v288 = vunpack.c.l.bf16 %v284
        %v289 = vlaneseq
        %v290 = vshrl.u32 %v289, 7
        %v291 = vadd.s32 %v290, 8
        %v292 = vadd.s32 %v290, 16
        %v293 = vadd.s32 %v290, 24
        %vm294 = vcmp.lt.s32.totalorder %v290, 0
        %v295 = vsub.s32 0, %v290
        %v296 = vsel %vm294, %v295, %v290
        %v297 = vshrl.u32 %v296, 4
        %v298 = vand.u32 %v296, 15
        %v299 = vsub.s32 0, %v298
        %v300 = vsel %vm294, %v299, %v298
        %vm301 = vcmp.lt.s32.totalorder %v291, 0
        %v302 = vsub.s32 0, %v291
        %v303 = vsel %vm301, %v302, %v291
        %v304 = vshrl.u32 %v303, 4
        %v305 = vand.u32 %v303, 15
        %v306 = vsub.s32 0, %v305
        %v307 = vsel %vm301, %v306, %v305
        %vm308 = vcmp.lt.s32.totalorder %v292, 0
        %v309 = vsub.s32 0, %v292
        %v310 = vsel %vm308, %v309, %v292
        %v311 = vshrl.u32 %v310, 4
        %v312 = vand.u32 %v310, 15
        %v313 = vsub.s32 0, %v312
        %v314 = vsel %vm308, %v313, %v312
        %vm315 = vcmp.lt.s32.totalorder %v293, 0
        %v316 = vsub.s32 0, %v293
        %v317 = vsel %vm315, %v316, %v293
        %v318 = vshrl.u32 %v317, 4
        %v319 = vand.u32 %v317, 15
        %v320 = vsub.s32 0, %v319
        %v321 = vsel %vm315, %v320, %v319
        %vm322 = vcmp.ne.s32.totalorder %v300, 0
        %vm323 = vcmp.ne.s32.totalorder %v307, 0
        %vm324 = vcmp.ne.s32.totalorder %v314, 0
        %vm325 = vcmp.ne.s32.totalorder %v321, 0
        %vm326 = vcmp.lt.s32.totalorder %v300, 0
        %vm327 = vcmp.lt.s32.totalorder %v307, 0
        %vm328 = vcmp.lt.s32.totalorder %v314, 0
        %vm329 = vcmp.lt.s32.totalorder %v321, 0
        %vm330 = vmand %vm326, %vm322
        %vm331 = vmand %vm327, %vm323
        %vm332 = vmand %vm328, %vm324
        %vm333 = vmand %vm329, %vm325
        %v334 = vadd.s32 %v300, 16
        %v335 = vadd.s32 %v307, 16
        %v336 = vadd.s32 %v314, 16
        %v337 = vadd.s32 %v321, 16
        %v338 = vsel %vm330, %v334, %v300
        %v339 = vsel %vm331, %v335, %v307
        %v340 = vsel %vm332, %v336, %v314
        %v341 = vsel %vm333, %v337, %v321
        %vm342 = vcmp.ne.s32.totalorder %v338, 0
        %vm343 = vcmp.ne.s32.totalorder %v339, 0
        %vm344 = vcmp.ne.s32.totalorder %v340, 0
        %vm345 = vcmp.ne.s32.totalorder %v341, 0
        %vm346 = vcmp.ne.s32.totalorder %v338, 15
        %vm347 = vcmp.ne.s32.totalorder %v339, 15
        %vm348 = vcmp.ne.s32.totalorder %v340, 15
        %vm349 = vcmp.ne.s32.totalorder %v341, 15
        %v350 = vrot.slane %v285, 7
        %v351 = vrot.slane %v286, 7
        %v352 = vrot.slane %v287, 7
        %v353 = vrot.slane %v288, 7
        %vm354 = vcmp.lt.s32.totalorder %v290, 1
        %v355 = vsel %vm354, %v352, %v353
        %v356 = vsel %vm354, %v351, %v352
        %v357 = vsel %vm354, %v350, %v351
        %v358 = vsel %vm354, %v353, %v350
        %v359 = vsel %vm342, %v358, 0.0
        %v360 = vsel %vm343, %v357, 0.0
        %v361 = vsel %vm344, %v356, 0.0
        %v362 = vsel %vm345, %v355, 0.0
        %v363 = vrot.slane %v285, 1
        %v364 = vrot.slane %v286, 1
        %v365 = vrot.slane %v287, 1
        %v366 = vrot.slane %v288, 1
        %vm367 = vcmp.lt.s32.totalorder %v290, 7
        %v368 = vsel %vm367, %v365, %v366
        %v369 = vsel %vm367, %v364, %v365
        %v370 = vsel %vm367, %v363, %v364
        %v371 = vsel %vm367, %v366, %v363
        %v372 = vsel %vm346, %v370, 0.0
        %v373 = vsel %vm347, %v369, 0.0
        %v374 = vsel %vm348, %v368, 0.0
        %v375 = vsel %vm349, %v371, 0.0
        %v376 = vpack.c.bf16 %v360, %v359
        %v377 = vpack.c.bf16 %v362, %v361
        %v378 = vld [vmem:[#allocation5] sm:$0xf]
        %v379 = vld [vmem:[#allocation5 + $0x4] sm:$0xf]
        %v380 = vld [vmem:[#allocation5 + $0x8] sm:$0xf]
        %v381 = vld [vmem:[#allocation5 + $0xc] sm:$0xf]
        %v382 = vld [vmem:[#allocation5 + $0x10] sm:$0xf]
        %v383 = vld [vmem:[#allocation5 + $0x14] sm:$0xf]
        %v384 = vld [vmem:[#allocation5 + $0x18] sm:$0xf]
        %v385 = vld [vmem:[#allocation5 + $0x1c] sm:$0xf]
        %v386 = vld [vmem:[#allocation5 + $0x20] sm:$0xf]
        %v387 = vld [vmem:[#allocation5 + $0x24] sm:$0xf]
        %v388 = vld [vmem:[#allocation5 + $0x28] sm:$0xf]
        %v389 = vld [vmem:[#allocation5 + $0x2c] sm:$0xf]
        %v390 = vld [vmem:[#allocation5 + $0x30] sm:$0xf]
        %v391 = vld [vmem:[#allocation5 + $0x34] sm:$0xf]
        %v392 = vld [vmem:[#allocation5 + $0x38] sm:$0xf]
        %v393 = vld [vmem:[#allocation5 + $0x3c] sm:$0xf]
        %v394 = vpack.c.bf16 %v286, %v285
        %v395 = vpack.c.bf16 %v288, %v287
        %v396 = vld [vmem:[#allocation5 + $0x40] sm:$0xf]
        %v397 = vld [vmem:[#allocation5 + $0x44] sm:$0xf]
        %v398 = vld [vmem:[#allocation5 + $0x48] sm:$0xf]
        %v399 = vld [vmem:[#allocation5 + $0x4c] sm:$0xf]
        %v400 = vld [vmem:[#allocation5 + $0x50] sm:$0xf]
        %v401 = vld [vmem:[#allocation5 + $0x54] sm:$0xf]
        %v402 = vld [vmem:[#allocation5 + $0x58] sm:$0xf]
        %v403 = vld [vmem:[#allocation5 + $0x5c] sm:$0xf]
        %v404 = vld [vmem:[#allocation5 + $0x60] sm:$0xf]
        %v405 = vld [vmem:[#allocation5 + $0x64] sm:$0xf]
        %v406 = vld [vmem:[#allocation5 + $0x68] sm:$0xf]
        %v407 = vld [vmem:[#allocation5 + $0x6c] sm:$0xf]
        %v408 = vld [vmem:[#allocation5 + $0x70] sm:$0xf]
        %v409 = vld [vmem:[#allocation5 + $0x74] sm:$0xf]
        %v410 = vld [vmem:[#allocation5 + $0x78] sm:$0xf]
        %v411 = vld [vmem:[#allocation5 + $0x7c] sm:$0xf]
        %v428 = vunpack.c.l.b16 %v396
        %v429 = vunpack.c.l.b16 %v397
        %v430 = vunpack.c.l.b16 %v398
        %v431 = vunpack.c.l.b16 %v399
        %v432 = vunpack.c.l.b16 %v400
        %v433 = vunpack.c.l.b16 %v401
        %v434 = vunpack.c.l.b16 %v402
        %v435 = vunpack.c.l.b16 %v403
        %v436 = vunpack.c.l.b16 %v404
        %v437 = vunpack.c.l.b16 %v405
        %v438 = vunpack.c.l.b16 %v406
        %v439 = vunpack.c.l.b16 %v407
        %v440 = vunpack.c.l.b16 %v408
        %v441 = vunpack.c.l.b16 %v409
        %v442 = vunpack.c.l.b16 %v410
        %v443 = vunpack.c.l.b16 %v411
        %v444 = vpack.c.b16 %v429, %v428
        %v445 = vpack.c.b16 %v431, %v430
        %v446 = vpack.c.b16 %v433, %v432
        %v447 = vpack.c.b16 %v435, %v434
        %v448 = vpack.c.b16 %v437, %v436
        %v449 = vpack.c.b16 %v439, %v438
        %v450 = vpack.c.b16 %v441, %v440
        %v451 = vpack.c.b16 %v443, %v442
        %460 = vmatpush.bf16.msra.mxu0 %v451
        %461 = vmatpush.bf16.msra.mxu0 %v450
        %462 = vmatpush.bf16.msra.mxu0 %v449
        %463 = vmatpush.bf16.msra.mxu0 %v448
        %464 = vmatpush.bf16.msra.mxu0 %v447
        %465 = vmatpush.bf16.msra.mxu0 %v446
        %466 = vmatpush.bf16.msra.mxu0 %v445
        %467 = vmatpush.bf16.msra.mxu0 %v444
        %468 = vmatmul.bf16.gmra.mxu0 %v394
        %v469 = vpop.f32.mrf.mxu0
        %v470 = vadd.f32 0.0, %v469
        %v471 = vpop.f32.mrf.mxu0
        %v472 = vadd.f32 0.0, %v471
        %473 = vmatmul.bf16.gmra.mxu0 %v395
        %v474 = vpop.f32.mrf.mxu0
        %v475 = vadd.f32 0.0, %v474
        %v476 = vpop.f32.mrf.mxu0
        %v477 = vadd.f32 0.0, %v476
        %478 = vdwg.mxu0
        %v495 = vunpack.c.l.b16 %v378
        %v496 = vunpack.c.l.b16 %v379
        %v497 = vunpack.c.l.b16 %v380
        %v498 = vunpack.c.l.b16 %v381
        %v499 = vunpack.c.l.b16 %v382
        %v500 = vunpack.c.l.b16 %v383
        %v501 = vunpack.c.l.b16 %v384
        %v502 = vunpack.c.l.b16 %v385
        %v503 = vunpack.c.l.b16 %v386
        %v504 = vunpack.c.l.b16 %v387
        %v505 = vunpack.c.l.b16 %v388
        %v506 = vunpack.c.l.b16 %v389
        %v507 = vunpack.c.l.b16 %v390
        %v508 = vunpack.c.l.b16 %v391
        %v509 = vunpack.c.l.b16 %v392
        %v510 = vunpack.c.l.b16 %v393
        %v511 = vpack.c.b16 %v496, %v495
        %v512 = vpack.c.b16 %v498, %v497
        %v513 = vpack.c.b16 %v500, %v499
        %v514 = vpack.c.b16 %v502, %v501
        %v515 = vpack.c.b16 %v504, %v503
        %v516 = vpack.c.b16 %v506, %v505
        %v517 = vpack.c.b16 %v508, %v507
        %v518 = vpack.c.b16 %v510, %v509
        %527 = vmatpush.bf16.msra.mxu0 %v518
        %528 = vmatpush.bf16.msra.mxu0 %v517
        %529 = vmatpush.bf16.msra.mxu0 %v516
        %530 = vmatpush.bf16.msra.mxu0 %v515
        %531 = vmatpush.bf16.msra.mxu0 %v514
        %532 = vmatpush.bf16.msra.mxu0 %v513
        %533 = vmatpush.bf16.msra.mxu0 %v512
        %534 = vmatpush.bf16.msra.mxu0 %v511
        %535 = vmatmul.bf16.gmra.mxu0 %v376
        %v536 = vpop.f32.mrf.mxu0
        %v537 = vadd.f32 %v470, %v536
        %v538 = vpop.f32.mrf.mxu0
        %v539 = vadd.f32 %v472, %v538
        %540 = vmatmul.bf16.gmra.mxu0 %v377
        %v541 = vpop.f32.mrf.mxu0
        %v542 = vadd.f32 %v475, %v541
        %v543 = vpop.f32.mrf.mxu0
        %v544 = vadd.f32 %v477, %v543
        %545 = vdwg.mxu0
        %v546 = vpack.c.bf16 %v373, %v372
        %v547 = vpack.c.bf16 %v375, %v374
        %v548 = vld [vmem:[#allocation5 + $0x80] sm:$0xf]
        %v549 = vld [vmem:[#allocation5 + $0x84] sm:$0xf]
        %v550 = vld [vmem:[#allocation5 + $0x88] sm:$0xf]
        %v551 = vld [vmem:[#allocation5 + $0x8c] sm:$0xf]
        %v552 = vld [vmem:[#allocation5 + $0x90] sm:$0xf]
        %v553 = vld [vmem:[#allocation5 + $0x94] sm:$0xf]
        %v554 = vld [vmem:[#allocation5 + $0x98] sm:$0xf]
        %v555 = vld [vmem:[#allocation5 + $0x9c] sm:$0xf]
        %v556 = vld [vmem:[#allocation5 + $0xa0] sm:$0xf]
        %v557 = vld [vmem:[#allocation5 + $0xa4] sm:$0xf]
        %v558 = vld [vmem:[#allocation5 + $0xa8] sm:$0xf]
        %v559 = vld [vmem:[#allocation5 + $0xac] sm:$0xf]
        %v560 = vld [vmem:[#allocation5 + $0xb0] sm:$0xf]
        %v561 = vld [vmem:[#allocation5 + $0xb4] sm:$0xf]
        %v562 = vld [vmem:[#allocation5 + $0xb8] sm:$0xf]
        %v563 = vld [vmem:[#allocation5 + $0xbc] sm:$0xf]
        %v580 = vunpack.c.l.b16 %v548
        %v581 = vunpack.c.l.b16 %v549
        %v582 = vunpack.c.l.b16 %v550
        %v583 = vunpack.c.l.b16 %v551
        %v584 = vunpack.c.l.b16 %v552
        %v585 = vunpack.c.l.b16 %v553
        %v586 = vunpack.c.l.b16 %v554
        %v587 = vunpack.c.l.b16 %v555
        %v588 = vunpack.c.l.b16 %v556
        %v589 = vunpack.c.l.b16 %v557
        %v590 = vunpack.c.l.b16 %v558
        %v591 = vunpack.c.l.b16 %v559
        %v592 = vunpack.c.l.b16 %v560
        %v593 = vunpack.c.l.b16 %v561
        %v594 = vunpack.c.l.b16 %v562
        %v595 = vunpack.c.l.b16 %v563
        %v596 = vpack.c.b16 %v581, %v580
        %v597 = vpack.c.b16 %v583, %v582
        %v598 = vpack.c.b16 %v585, %v584
        %v599 = vpack.c.b16 %v587, %v586
        %v600 = vpack.c.b16 %v589, %v588
        %v601 = vpack.c.b16 %v591, %v590
        %v602 = vpack.c.b16 %v593, %v592
        %v603 = vpack.c.b16 %v595, %v594
        %612 = vmatpush.bf16.msra.mxu0 %v603
        %613 = vmatpush.bf16.msra.mxu0 %v602
        %614 = vmatpush.bf16.msra.mxu0 %v601
        %615 = vmatpush.bf16.msra.mxu0 %v600
        %616 = vmatpush.bf16.msra.mxu0 %v599
        %617 = vmatpush.bf16.msra.mxu0 %v598
        %618 = vmatpush.bf16.msra.mxu0 %v597
        %619 = vmatpush.bf16.msra.mxu0 %v596
        %620 = vmatmul.bf16.gmra.mxu0 %v546
        %v621 = vpop.f32.mrf.mxu0
        %v622 = vadd.f32 0.0, %v621
        %v623 = vpop.f32.mrf.mxu0
        %v624 = vadd.f32 0.0, %v623
        %625 = vmatmul.bf16.gmra.mxu0 %v547
        %v626 = vpop.f32.mrf.mxu0
        %v627 = vadd.f32 0.0, %v626
        %v628 = vpop.f32.mrf.mxu0
        %v629 = vadd.f32 0.0, %v628
        %630 = vdwg.mxu0
        %v631 = vadd.f32 %v537, %v622
        %v632 = vadd.f32 %v539, %v624
        %v633 = vadd.f32 %v542, %v627
        %v634 = vadd.f32 %v544, %v629
        %v635 = vld [vmem:[%s2] sm:$0x1]
        %v637 = vperm.slane %v635, 0
        %v639 = vadd.f32 %v631, %v637
        %v640 = vadd.f32 %v632, %v637
        %v641 = vadd.f32 %v633, %v637
        %v642 = vadd.f32 %v634, %v637
        %v643 = vmax.f32 %v639, 0.0
        %v644 = vmax.f32 %v640, 0.0
        %v645 = vmax.f32 %v641, 0.0
        %v646 = vmax.f32 %v642, 0.0
        %v647 = vrot.slane %v643, 7
        %v648 = vrot.slane %v644, 7
        %v649 = vrot.slane %v645, 7
        %v650 = vrot.slane %v646, 7
        %v651 = vsel %vm354, %v649, %v650
        %v652 = vsel %vm354, %v648, %v649
        %v653 = vsel %vm354, %v647, %v648
        %v654 = vsel %vm354, %v650, %v647
        %v655 = vsel %vm342, %v654, 0.0
        %v656 = vsel %vm343, %v653, 0.0
        %v657 = vsel %vm344, %v652, 0.0
        %v658 = vsel %vm345, %v651, 0.0
        %v659 = vrot.slane %v643, 1
        %v660 = vrot.slane %v644, 1
        %v661 = vrot.slane %v645, 1
        %v662 = vrot.slane %v646, 1
        %v663 = vsel %vm367, %v661, %v662
        %v664 = vsel %vm367, %v660, %v661
        %v665 = vsel %vm367, %v659, %v660
        %v666 = vsel %vm367, %v662, %v659
        %v667 = vsel %vm346, %v665, 0.0
        %v668 = vsel %vm347, %v664, 0.0
        %v669 = vsel %vm348, %v663, 0.0
        %v670 = vsel %vm349, %v666, 0.0
        %v671 = vpack.c.bf16 %v656, %v655
        %v672 = vpack.c.bf16 %v658, %v657
        %v673 = vld [vmem:[#allocation7] sm:$0xf]
        %v674 = vld [vmem:[#allocation7 + $0x4] sm:$0xf]
        %v675 = vld [vmem:[#allocation7 + $0x8] sm:$0xf]
        %v676 = vld [vmem:[#allocation7 + $0xc] sm:$0xf]
        %v677 = vld [vmem:[#allocation7 + $0x10] sm:$0xf]
        %v678 = vld [vmem:[#allocation7 + $0x14] sm:$0xf]
        %v679 = vld [vmem:[#allocation7 + $0x18] sm:$0xf]
        %v680 = vld [vmem:[#allocation7 + $0x1c] sm:$0xf]
        %v681 = vld [vmem:[#allocation7 + $0x20] sm:$0xf]
        %v682 = vld [vmem:[#allocation7 + $0x24] sm:$0xf]
        %v683 = vld [vmem:[#allocation7 + $0x28] sm:$0xf]
        %v684 = vld [vmem:[#allocation7 + $0x2c] sm:$0xf]
        %v685 = vld [vmem:[#allocation7 + $0x30] sm:$0xf]
        %v686 = vld [vmem:[#allocation7 + $0x34] sm:$0xf]
        %v687 = vld [vmem:[#allocation7 + $0x38] sm:$0xf]
        %v688 = vld [vmem:[#allocation7 + $0x3c] sm:$0xf]
        %v689 = vpack.c.bf16 %v644, %v643
        %v690 = vpack.c.bf16 %v646, %v645
        %v691 = vld [vmem:[#allocation7 + $0x40] sm:$0xf]
        %v692 = vld [vmem:[#allocation7 + $0x44] sm:$0xf]
        %v693 = vld [vmem:[#allocation7 + $0x48] sm:$0xf]
        %v694 = vld [vmem:[#allocation7 + $0x4c] sm:$0xf]
        %v695 = vld [vmem:[#allocation7 + $0x50] sm:$0xf]
        %v696 = vld [vmem:[#allocation7 + $0x54] sm:$0xf]
        %v697 = vld [vmem:[#allocation7 + $0x58] sm:$0xf]
        %v698 = vld [vmem:[#allocation7 + $0x5c] sm:$0xf]
        %v699 = vld [vmem:[#allocation7 + $0x60] sm:$0xf]
        %v700 = vld [vmem:[#allocation7 + $0x64] sm:$0xf]
        %v701 = vld [vmem:[#allocation7 + $0x68] sm:$0xf]
        %v702 = vld [vmem:[#allocation7 + $0x6c] sm:$0xf]
        %v703 = vld [vmem:[#allocation7 + $0x70] sm:$0xf]
        %v704 = vld [vmem:[#allocation7 + $0x74] sm:$0xf]
        %v705 = vld [vmem:[#allocation7 + $0x78] sm:$0xf]
        %v706 = vld [vmem:[#allocation7 + $0x7c] sm:$0xf]
        %v723 = vunpack.c.l.b16 %v691
        %v724 = vunpack.c.l.b16 %v692
        %v725 = vunpack.c.l.b16 %v693
        %v726 = vunpack.c.l.b16 %v694
        %v727 = vunpack.c.l.b16 %v695
        %v728 = vunpack.c.l.b16 %v696
        %v729 = vunpack.c.l.b16 %v697
        %v730 = vunpack.c.l.b16 %v698
        %v731 = vunpack.c.l.b16 %v699
        %v732 = vunpack.c.l.b16 %v700
        %v733 = vunpack.c.l.b16 %v701
        %v734 = vunpack.c.l.b16 %v702
        %v735 = vunpack.c.l.b16 %v703
        %v736 = vunpack.c.l.b16 %v704
        %v737 = vunpack.c.l.b16 %v705
        %v738 = vunpack.c.l.b16 %v706
        %v739 = vpack.c.b16 %v724, %v723
        %v740 = vpack.c.b16 %v726, %v725
        %v741 = vpack.c.b16 %v728, %v727
        %v742 = vpack.c.b16 %v730, %v729
        %v743 = vpack.c.b16 %v732, %v731
        %v744 = vpack.c.b16 %v734, %v733
        %v745 = vpack.c.b16 %v736, %v735
        %v746 = vpack.c.b16 %v738, %v737
        %755 = vmatpush.bf16.msra.mxu0 %v746
        %756 = vmatpush.bf16.msra.mxu0 %v745
        %757 = vmatpush.bf16.msra.mxu0 %v744
        %758 = vmatpush.bf16.msra.mxu0 %v743
        %759 = vmatpush.bf16.msra.mxu0 %v742
        %760 = vmatpush.bf16.msra.mxu0 %v741
        %761 = vmatpush.bf16.msra.mxu0 %v740
        %762 = vmatpush.bf16.msra.mxu0 %v739
        %763 = vmatmul.bf16.gmra.mxu0 %v689
        %v764 = vpop.f32.mrf.mxu0
        %v765 = vadd.f32 0.0, %v764
        %v766 = vpop.f32.mrf.mxu0
        %v767 = vadd.f32 0.0, %v766
        %768 = vmatmul.bf16.gmra.mxu0 %v690
        %v769 = vpop.f32.mrf.mxu0
        %v770 = vadd.f32 0.0, %v769
        %v771 = vpop.f32.mrf.mxu0
        %v772 = vadd.f32 0.0, %v771
        %773 = vdwg.mxu0
        %v790 = vunpack.c.l.b16 %v673
        %v791 = vunpack.c.l.b16 %v674
        %v792 = vunpack.c.l.b16 %v675
        %v793 = vunpack.c.l.b16 %v676
        %v794 = vunpack.c.l.b16 %v677
        %v795 = vunpack.c.l.b16 %v678
        %v796 = vunpack.c.l.b16 %v679
        %v797 = vunpack.c.l.b16 %v680
        %v798 = vunpack.c.l.b16 %v681
        %v799 = vunpack.c.l.b16 %v682
        %v800 = vunpack.c.l.b16 %v683
        %v801 = vunpack.c.l.b16 %v684
        %v802 = vunpack.c.l.b16 %v685
        %v803 = vunpack.c.l.b16 %v686
        %v804 = vunpack.c.l.b16 %v687
        %v805 = vunpack.c.l.b16 %v688
        %v806 = vpack.c.b16 %v791, %v790
        %v807 = vpack.c.b16 %v793, %v792
        %v808 = vpack.c.b16 %v795, %v794
        %v809 = vpack.c.b16 %v797, %v796
        %v810 = vpack.c.b16 %v799, %v798
        %v811 = vpack.c.b16 %v801, %v800
        %v812 = vpack.c.b16 %v803, %v802
        %v813 = vpack.c.b16 %v805, %v804
        %822 = vmatpush.bf16.msra.mxu0 %v813
        %823 = vmatpush.bf16.msra.mxu0 %v812
        %824 = vmatpush.bf16.msra.mxu0 %v811
        %825 = vmatpush.bf16.msra.mxu0 %v810
        %826 = vmatpush.bf16.msra.mxu0 %v809
        %827 = vmatpush.bf16.msra.mxu0 %v808
        %828 = vmatpush.bf16.msra.mxu0 %v807
        %829 = vmatpush.bf16.msra.mxu0 %v806
        %830 = vmatmul.bf16.gmra.mxu0 %v671
        %v831 = vpop.f32.mrf.mxu0
        %v832 = vadd.f32 %v765, %v831
        %v833 = vpop.f32.mrf.mxu0
        %v834 = vadd.f32 %v767, %v833
        %835 = vmatmul.bf16.gmra.mxu0 %v672
        %v836 = vpop.f32.mrf.mxu0
        %v837 = vadd.f32 %v770, %v836
        %v838 = vpop.f32.mrf.mxu0
        %v839 = vadd.f32 %v772, %v838
        %840 = vdwg.mxu0
        %v841 = vpack.c.bf16 %v668, %v667
        %v842 = vpack.c.bf16 %v670, %v669
        %v843 = vld [vmem:[#allocation7 + $0x80] sm:$0xf]
        %v844 = vld [vmem:[#allocation7 + $0x84] sm:$0xf]
        %v845 = vld [vmem:[#allocation7 + $0x88] sm:$0xf]
        %v846 = vld [vmem:[#allocation7 + $0x8c] sm:$0xf]
        %v847 = vld [vmem:[#allocation7 + $0x90] sm:$0xf]
        %v848 = vld [vmem:[#allocation7 + $0x94] sm:$0xf]
        %v849 = vld [vmem:[#allocation7 + $0x98] sm:$0xf]
        %v850 = vld [vmem:[#allocation7 + $0x9c] sm:$0xf]
        %v851 = vld [vmem:[#allocation7 + $0xa0] sm:$0xf]
        %v852 = vld [vmem:[#allocation7 + $0xa4] sm:$0xf]
        %v853 = vld [vmem:[#allocation7 + $0xa8] sm:$0xf]
        %v854 = vld [vmem:[#allocation7 + $0xac] sm:$0xf]
        %v855 = vld [vmem:[#allocation7 + $0xb0] sm:$0xf]
        %v856 = vld [vmem:[#allocation7 + $0xb4] sm:$0xf]
        %v857 = vld [vmem:[#allocation7 + $0xb8] sm:$0xf]
        %v858 = vld [vmem:[#allocation7 + $0xbc] sm:$0xf]
        %v875 = vunpack.c.l.b16 %v843
        %v876 = vunpack.c.l.b16 %v844
        %v877 = vunpack.c.l.b16 %v845
        %v878 = vunpack.c.l.b16 %v846
        %v879 = vunpack.c.l.b16 %v847
        %v880 = vunpack.c.l.b16 %v848
        %v881 = vunpack.c.l.b16 %v849
        %v882 = vunpack.c.l.b16 %v850
        %v883 = vunpack.c.l.b16 %v851
        %v884 = vunpack.c.l.b16 %v852
        %v885 = vunpack.c.l.b16 %v853
        %v886 = vunpack.c.l.b16 %v854
        %v887 = vunpack.c.l.b16 %v855
        %v888 = vunpack.c.l.b16 %v856
        %v889 = vunpack.c.l.b16 %v857
        %v890 = vunpack.c.l.b16 %v858
        %v891 = vpack.c.b16 %v876, %v875
        %v892 = vpack.c.b16 %v878, %v877
        %v893 = vpack.c.b16 %v880, %v879
        %v894 = vpack.c.b16 %v882, %v881
        %v895 = vpack.c.b16 %v884, %v883
        %v896 = vpack.c.b16 %v886, %v885
        %v897 = vpack.c.b16 %v888, %v887
        %v898 = vpack.c.b16 %v890, %v889
        %907 = vmatpush.bf16.msra.mxu0 %v898
        %908 = vmatpush.bf16.msra.mxu0 %v897
        %909 = vmatpush.bf16.msra.mxu0 %v896
        %910 = vmatpush.bf16.msra.mxu0 %v895
        %911 = vmatpush.bf16.msra.mxu0 %v894
        %912 = vmatpush.bf16.msra.mxu0 %v893
        %913 = vmatpush.bf16.msra.mxu0 %v892
        %914 = vmatpush.bf16.msra.mxu0 %v891
        %915 = vmatmul.bf16.gmra.mxu0 %v841
        %v916 = vpop.f32.mrf.mxu0
        %v917 = vadd.f32 0.0, %v916
        %v918 = vpop.f32.mrf.mxu0
        %v919 = vadd.f32 0.0, %v918
        %920 = vmatmul.bf16.gmra.mxu0 %v842
        %v921 = vpop.f32.mrf.mxu0
        %v922 = vadd.f32 0.0, %v921
        %v923 = vpop.f32.mrf.mxu0
        %v924 = vadd.f32 0.0, %v923
        %925 = vdwg.mxu0
        %v926 = vadd.f32 %v832, %v917
        %v927 = vadd.f32 %v834, %v919
        %v928 = vadd.f32 %v837, %v922
        %v929 = vadd.f32 %v839, %v924
        %v930 = vld [vmem:[%s4] sm:$0x1]
        %v932 = vperm.slane %v930, 0
        %v934 = vadd.f32 %v926, %v932
        %v935 = vadd.f32 %v927, %v932
        %v936 = vadd.f32 %v928, %v932
        %v937 = vadd.f32 %v929, %v932
        %v938 = vadd.f32 %v934, %v285
        %v939 = vadd.f32 %v935, %v286
        %v940 = vadd.f32 %v936, %v287
        %v941 = vadd.f32 %v937, %v288
        %v942 = vmax.f32 %v938, 0.0
        %v943 = vmax.f32 %v939, 0.0
        %v944 = vmax.f32 %v940, 0.0
        %v945 = vmax.f32 %v941, 0.0
        %946 = vst [vmem:[%s278] sm:$0xff] %v942
        %947 = vst [vmem:[%s278 + $0x8] sm:$0xff] %v943
        %948 = vst [vmem:[%s278 + $0x10] sm:$0xff] %v944
        %949 = vst [vmem:[%s278 + $0x18] sm:$0xff] %v945
        %s950 = sand.u32 %s141, 1
        %s951 = scalar_lea.sflag [#allocation4], %s950
        %s952 = sand.u32 %s141, 1
        %s953 = smul.addr %s952, 32
        %s954 = scalar_lea.vmem [#allocation8], %s953
        // Predicated region
        $region53: #{tpu_custom_call.1} parent=39 // pred_check
          %p955 = pneg %p151
        $region54: #{tpu_custom_call.1} parent=39 // pred_check_branch
          %957 = sbr.rel (%p955) target = $region56
        $region55: #{tpu_custom_call.1} parent=39 // pred_region
          %s958 = smul.u32 2, %s23
          %960 = vsyncadd %s951, 0
          %s961 = smul.addr %s958, 2
          %s962 = smul.addr %s961, 8
          %s963 = scalar_lea.hbm %s5, %s962
          %s964 = sshll.u32 %s954, 4
          %s965 = int_to_ptr.vmem [resolvable:$true] %s964
          %s966 = sshll.u32 %s963, 4
          %s967 = int_to_ptr.hbm [resolvable:$true] %s966
          %972 = dma.vmem_to_hbm [thread:$0]  %s965, 512, %s967, %s951, 128, 128, 8
        $region56: #{tpu_custom_call.1} parent=39 // pred_fallthru
          _
      $region40: #{tpu_custom_call.1} parent=5 // pred_fallthru
        _
      %p973 = scmp.le.s32.totalorder 2, %s18
      // Predicated region
      $region57: #{tpu_custom_call.1} parent=5 // pred_check
        %p974 = pneg %p973
      $region58: #{tpu_custom_call.1} parent=5 // pred_check_branch
        %976 = sbr.rel (%p974) target = $region60
      $region59: #{tpu_custom_call.1} parent=5 // pred_region
        %s977 = ssub.s32 %s18, 2
        // Predicated region
        $region61: #{tpu_custom_call.1} parent=59 // pred_check
          %p978 = pneg %p157
        $region62: #{tpu_custom_call.1} parent=59 // pred_check_branch
          %980 = sbr.rel (%p978) target = $region64
        $region63: #{tpu_custom_call.1} parent=59 // pred_region
          %s981 = sand.u32 %s142, 1
          %s982 = scalar_lea.sflag [#allocation4], %s981
          %s983 = sand.u32 %s142, 1
          %s984 = smul.addr %s983, 32
          %s985 = scalar_lea.vmem [#allocation8], %s984
          %987 = dma.done %s982, 512
        $region64: #{tpu_custom_call.1} parent=59 // pred_fallthru
          _
      $region60: #{tpu_custom_call.1} parent=5 // pred_fallthru
        _
    $region6: #{tpu_custom_call.1} parent=1 // loop_footer
      %s22 = sadd.s32 1, %s18
    $region7: #{tpu_custom_call.1} parent=1 // loop_footer_branch
      %17 = sbr.rel target = $region3
    $region8: #{tpu_custom_call.1} parent=1 // loop_exit
      _
    %988 = vsyncpa [#allocation3], 1
    %s989 = scalar_lea.sflag [#allocation3], 1
    %990 = vsyncpa %s989, 1
    %991 = vsyncpa [#allocation6], 1
    %992 = vsyncpa [#allocation4], 1
    %s993 = scalar_lea.sflag [#allocation4], 1
    %994 = vsyncpa %s993, 1

// kernel: tpu_custom_call.1
$region0: #{tpu_custom_call.1}
  #allocation0 [shape = 'u32[]', space=smem, size = 0x4, offset = 0x4, fixed_abs, tag = 'smem constant byte address 0x4 - core index']
  #allocation1 [shape = 'u32[72,128]{1,0:T(1,128)}', space=vmem, size = 0x9000, scoped, tag = 'internal scratch']
  %s0 = inlined_call_operand.hbm [shape: bf16[4,16,128], index: 0, kind: input, shape index: {}]
  %s1 = inlined_call_operand.hbm [shape: bf16[384,128], index: 1, kind: input, shape index: {}]
  %s2 = inlined_call_operand.vmem [shape: f32[1,128], index: 2, kind: input, shape index: {}]
  %s3 = inlined_call_operand.hbm [shape: bf16[384,128], index: 3, kind: input, shape index: {}]
  %s4 = inlined_call_operand.vmem [shape: f32[1,128], index: 4, kind: input, shape index: {}]
  %s5 = inlined_call_operand.hbm [shape: f32[4,16,128], index: 5, kind: output, shape index: {}]
  %s6 = sld [smem:[#allocation0]]
  $region65: #{tpu_custom_call.1} parent=0
    _
  %s8 = ssub.s32 1, %s6
  %s9 = scalar_select 0, %s8, %s6
  $region1: #{tpu_custom_call.1} parent=0
    #allocation2 [shape = 'u8[16384]{0}', space=vmem, size = 0x4000, scoped, tag = 'input window, operand 0']
    #allocation3 [shape = 's32[2]{0}', space=sflag, size = 0x8, scoped, tag = 'scoped memory for tpu_custom_call.1']
    #allocation4 [shape = 's32[2]{0}', space=sflag, size = 0x8, scoped, tag = 'scoped memory for tpu_custom_call.1']
    #allocation5 [shape = 'u8[98304]{0}', space=vmem, size = 0x18000, scoped, tag = 'input window, operand 1, single buffered']
    #allocation6 [shape = 's32[1]{0}', space=sflag, size = 0x4, scoped, tag = 'scoped memory for tpu_custom_call.1']
    #allocation7 [shape = 'u8[98304]{0}', space=vmem, size = 0x18000, scoped, tag = 'input window, operand 3, single buffered']
    #allocation8 [shape = 'u8[32768]{0}', space=vmem, size = 0x8000, scoped, tag = 'output window, operand 0']
    %10 = vsyncpa [#allocation3], 0
    %s11 = scalar_lea.sflag [#allocation3], 1
    %12 = vsyncpa %s11, 0
    %13 = vsyncpa [#allocation6], 0
    %14 = vsyncpa [#allocation4], 0
    %s15 = scalar_lea.sflag [#allocation4], 1
    %16 = vsyncpa %s15, 0
    loop: start=0, step=1, limit=4
    $region2: #{tpu_custom_call.1} parent=1 // loop_pre_header
      _
    $region3: #{tpu_custom_call.1} parent=1 // loop_header
      %s18 = sphi 0, %s22
      %p19 = scmp.ge.s32.totalorder %s18, 4
      %s28 = sphi 0, %s30
      %s31 = sphi 0, %s28
      %s32 = sphi 0, %s31
      %s48 = sphi 0, %s32
      %s52 = sphi 0, %s52
      %s54 = sphi 0, %s52
      %s55 = sphi 0, %s54
      %s69 = sphi 0, %s55
      %s73 = sphi 0, %s73
      %s75 = sphi 0, %s73
      %s76 = sphi 0, %s75
      %s90 = sphi 0, %s76
      %s94 = sphi 0, %s94
      %s96 = sphi 0, %s94
      %s97 = sphi 0, %s96
      %s111 = sphi 0, %s97
      %s115 = sphi 0, %s115
      %s117 = sphi 0, %s115
      %s118 = sphi 0, %s117
      %s132 = sphi 0, %s118
      %s138 = sphi 0, %s140
      %s141 = sphi 0, %s138
      %s142 = sphi 0, %s141
      %s158 = sphi 0, %s142
    $region4: #{tpu_custom_call.1} parent=1 // loop_header_branch
      %21 = sbr.rel (%p19) target = $region8
    $region5: #{tpu_custom_call.1} parent=1 // loop_body
      %s23 = ssub.s32 %s18, 1
      %s24 = ssub.s32 %s18, 2
      %s25 = sadd.s32 %s18, 1
      %s26 = ssub.s32 %s18, %s25
      %p27 = scmp.eq.s32.totalorder %s26, 0
      %s29 = sadd.s32 %s28, 1
      %s30 = scalar_select %p27, %s28, %s29
      %p33 = pneg %p27
      %p34 = scmp.eq.s32.totalorder %s18, 1
      %p35 = por %p33, %p34
      %p36 = scmp.ne.s32.totalorder %s28, %s31
      %p37 = scmp.eq.s32.totalorder %s18, 0
      %p38 = por %p36, %p37
      %p39 = scmp.ne.s32.totalorder %s28, %s31
      %p40 = scmp.eq.s32.totalorder %s23, 1
      %p41 = por %p39, %p40
      %p42 = scmp.ne.s32.totalorder %s31, %s32
      %p43 = scmp.eq.s32.totalorder %s23, 0
      %p44 = por %p42, %p43
      %p45 = scmp.ne.s32.totalorder %s31, %s32
      %p46 = scmp.eq.s32.totalorder %s24, 1
      %p47 = por %p45, %p46
      %p49 = scmp.ne.s32.totalorder %s32, %s48
      %p50 = scmp.eq.s32.totalorder %s24, 0
      %p51 = por %p49, %p50
      %s53 = sadd.s32 %s52, 1
      %p56 = scmp.eq.s32.totalorder %s18, 1
      %p57 = scmp.ne.s32.totalorder %s52, %s54
      %p58 = scmp.eq.s32.totalorder %s18, 0
      %p59 = por %p57, %p58
      %p60 = scmp.ne.s32.totalorder %s52, %s54
      %p61 = scmp.eq.s32.totalorder %s23, 1
      %p62 = por %p60, %p61
      %p63 = scmp.ne.s32.totalorder %s54, %s55
      %p64 = scmp.eq.s32.totalorder %s23, 0
      %p65 = por %p63, %p64
      %p66 = scmp.ne.s32.totalorder %s54, %s55
      %p67 = scmp.eq.s32.totalorder %s24, 1
      %p68 = por %p66, %p67
      %p70 = scmp.ne.s32.totalorder %s55, %s69
      %p71 = scmp.eq.s32.totalorder %s24, 0
      %p72 = por %p70, %p71
      %s74 = sadd.s32 %s73, 1
      %p77 = scmp.eq.s32.totalorder %s18, 1
      %p78 = scmp.ne.s32.totalorder %s73, %s75
      %p79 = scmp.eq.s32.totalorder %s18, 0
      %p80 = por %p78, %p79
      %p81 = scmp.ne.s32.totalorder %s73, %s75
      %p82 = scmp.eq.s32.totalorder %s23, 1
      %p83 = por %p81, %p82
      %p84 = scmp.ne.s32.totalorder %s75, %s76
      %p85 = scmp.eq.s32.totalorder %s23, 0
      %p86 = por %p84, %p85
      %p87 = scmp.ne.s32.totalorder %s75, %s76
      %p88 = scmp.eq.s32.totalorder %s24, 1
      %p89 = por %p87, %p88
      %p91 = scmp.ne.s32.totalorder %s76, %s90
      %p92 = scmp.eq.s32.totalorder %s24, 0
      %p93 = por %p91, %p92
      %s95 = sadd.s32 %s94, 1
      %p98 = scmp.eq.s32.totalorder %s18, 1
      %p99 = scmp.ne.s32.totalorder %s94, %s96
      %p100 = scmp.eq.s32.totalorder %s18, 0
      %p101 = por %p99, %p100
      %p102 = scmp.ne.s32.totalorder %s94, %s96
      %p103 = scmp.eq.s32.totalorder %s23, 1
      %p104 = por %p102, %p103
      %p105 = scmp.ne.s32.totalorder %s96, %s97
      %p106 = scmp.eq.s32.totalorder %s23, 0
      %p107 = por %p105, %p106
      %p108 = scmp.ne.s32.totalorder %s96, %s97
      %p109 = scmp.eq.s32.totalorder %s24, 1
      %p110 = por %p108, %p109
      %p112 = scmp.ne.s32.totalorder %s97, %s111
      %p113 = scmp.eq.s32.totalorder %s24, 0
      %p114 = por %p112, %p113
      %s116 = sadd.s32 %s115, 1
      %p119 = scmp.eq.s32.totalorder %s18, 1
      %p120 = scmp.ne.s32.totalorder %s115, %s117
      %p121 = scmp.eq.s32.totalorder %s18, 0
      %p122 = por %p120, %p121
      %p123 = scmp.ne.s32.totalorder %s115, %s117
      %p124 = scmp.eq.s32.totalorder %s23, 1
      %p125 = por %p123, %p124
      %p126 = scmp.ne.s32.totalorder %s117, %s118
      %p127 = scmp.eq.s32.totalorder %s23, 0
      %p128 = por %p126, %p127
      %p129 = scmp.ne.s32.totalorder %s117, %s118
      %p130 = scmp.eq.s32.totalorder %s24, 1
      %p131 = por %p129, %p130
      %p133 = scmp.ne.s32.totalorder %s118, %s132
      %p134 = scmp.eq.s32.totalorder %s24, 0
      %p135 = por %p133, %p134
      %s136 = ssub.s32 %s18, %s25
      %p137 = scmp.eq.s32.totalorder %s136, 0
      %s139 = sadd.s32 %s138, 1
      %s140 = scalar_select %p137, %s138, %s139
      %p143 = pneg %p137
      %p144 = scmp.eq.s32.totalorder %s18, 1
      %p145 = por %p143, %p144
      %p146 = scmp.ne.s32.totalorder %s138, %s141
      %p147 = scmp.eq.s32.totalorder %s18, 0
      %p148 = por %p146, %p147
      %p149 = scmp.ne.s32.totalorder %s138, %s141
      %p150 = scmp.eq.s32.totalorder %s23, 1
      %p151 = por %p149, %p150
      %p152 = scmp.ne.s32.totalorder %s141, %s142
      %p153 = scmp.eq.s32.totalorder %s23, 0
      %p154 = por %p152, %p153
      %p155 = scmp.ne.s32.totalorder %s141, %s142
      %p156 = scmp.eq.s32.totalorder %s24, 1
      %p157 = por %p155, %p156
      %p159 = scmp.ne.s32.totalorder %s142, %s158
      %p160 = scmp.eq.s32.totalorder %s24, 0
      %p161 = por %p159, %p160
      %p162 = scmp.le.s32.totalorder 1, %s18
      %p163 = scmp.lt.s32.totalorder %s18, 3
      %p164 = pnand %p162, %p163
      %p165 = pneg %p164
      // Predicated region
      $region9: #{tpu_custom_call.1} parent=5 // pred_check
        _
      $region10: #{tpu_custom_call.1} parent=5 // pred_check_branch
        %167 = sbr.rel (%p164) target = $region12
      $region11: #{tpu_custom_call.1} parent=5 // pred_region
        %s168 = ssub.s32 %s18, 1
        // Predicated region
        $region13: #{tpu_custom_call.1} parent=11 // pred_check
          %p169 = pneg %p65
        $region14: #{tpu_custom_call.1} parent=11 // pred_check_branch
          %171 = sbr.rel (%p169) target = $region16
        $region15: #{tpu_custom_call.1} parent=11 // pred_region
          %173 = vsyncadd [#allocation6], 0
          %s174 = sshll.u32 %s1, 4
          %s175 = int_to_ptr.hbm [resolvable:$true] %s174
          %s176 = sshll.u32 [#allocation5], 4
          %s177 = int_to_ptr.vmem [resolvable:$true] %s176
          %182 = dma.hbm_to_vmem [thread:$0]  %s175, 3072, %s177, [#allocation6], 64, 64, 4
        $region16: #{tpu_custom_call.1} parent=11 // pred_fallthru
          _
        // Predicated region
        $region17: #{tpu_custom_call.1} parent=11 // pred_check
          %p183 = pneg %p86
        $region18: #{tpu_custom_call.1} parent=11 // pred_check_branch
          %185 = sbr.rel (%p183) target = $region20
        $region19: #{tpu_custom_call.1} parent=11 // pred_region
          _
        $region20: #{tpu_custom_call.1} parent=11 // pred_fallthru
          _
        // Predicated region
        $region21: #{tpu_custom_call.1} parent=11 // pred_check
          %p186 = pneg %p107
        $region22: #{tpu_custom_call.1} parent=11 // pred_check_branch
          %188 = sbr.rel (%p186) target = $region24
        $region23: #{tpu_custom_call.1} parent=11 // pred_region
          %190 = vsyncadd [#allocation6], 0
          %s191 = sshll.u32 %s3, 4
          %s192 = int_to_ptr.hbm [resolvable:$true] %s191
          %s193 = sshll.u32 [#allocation7], 4
          %s194 = int_to_ptr.vmem [resolvable:$true] %s193
          %199 = dma.hbm_to_vmem [thread:$0]  %s192, 3072, %s194, [#allocation6], 64, 64, 4
        $region24: #{tpu_custom_call.1} parent=11 // pred_fallthru
          _
        // Predicated region
        $region25: #{tpu_custom_call.1} parent=11 // pred_check
          %p200 = pneg %p128
        $region26: #{tpu_custom_call.1} parent=11 // pred_check_branch
          %202 = sbr.rel (%p200) target = $region28
        $region27: #{tpu_custom_call.1} parent=11 // pred_region
          _
        $region28: #{tpu_custom_call.1} parent=11 // pred_fallthru
          _
      $region12: #{tpu_custom_call.1} parent=5 // pred_fallthru
        _
      %p203 = scmp.lt.s32.totalorder %s18, 2
      // Predicated region
      $region29: #{tpu_custom_call.1} parent=5 // pred_check
        %p204 = pneg %p203
      $region30: #{tpu_custom_call.1} parent=5 // pred_check_branch
        %206 = sbr.rel (%p204) target = $region32
      $region31: #{tpu_custom_call.1} parent=5 // pred_region
        // Predicated region
        $region33: #{tpu_custom_call.1} parent=31 // pred_check
          %p207 = pneg %p38
        $region34: #{tpu_custom_call.1} parent=31 // pred_check_branch
          %209 = sbr.rel (%p207) target = $region36
        $region35: #{tpu_custom_call.1} parent=31 // pred_region
          %s210 = sand.u32 %s28, 1
          %s211 = scalar_lea.sflag [#allocation3], %s210
          %s212 = sand.u32 %s28, 1
          %s213 = smul.addr %s212, 16
          %s214 = scalar_lea.vmem [#allocation2], %s213
          %s215 = smul.u32 2, %s18
          %217 = vsyncadd %s211, 0
          %s218 = smul.addr %s215, 2
          %s219 = smul.addr %s218, 4
          %s220 = scalar_lea.hbm %s0, %s219
          %s221 = sshll.u32 %s220, 4
          %s222 = int_to_ptr.hbm [resolvable:$true] %s221
          %s223 = sshll.u32 %s214, 4
          %s224 = int_to_ptr.vmem [resolvable:$true] %s223
          %229 = dma.hbm_to_vmem [thread:$0]  %s222, 256, %s224, %s211, 64, 64, 4
        $region36: #{tpu_custom_call.1} parent=31 // pred_fallthru
          _
      $region32: #{tpu_custom_call.1} parent=5 // pred_fallthru
        _
      %p230 = scmp.le.s32.totalorder 1, %s18
      %p231 = scmp.lt.s32.totalorder %s18, 3
      %p232 = pnand %p230, %p231
      %p233 = pneg %p232
      // Predicated region
      $region37: #{tpu_custom_call.1} parent=5 // pred_check
        _
      $region38: #{tpu_custom_call.1} parent=5 // pred_check_branch
        %235 = sbr.rel (%p232) target = $region40
      $region39: #{tpu_custom_call.1} parent=5 // pred_region
        %s236 = ssub.s32 %s18, 1
        %s237 = sand.u32 %s31, 1
        %s238 = scalar_lea.sflag [#allocation3], %s237
        %s239 = sand.u32 %s31, 1
        %s240 = smul.addr %s239, 16
        %s241 = scalar_lea.vmem [#allocation2], %s240
        // Predicated region
        $region41: #{tpu_custom_call.1} parent=39 // pred_check
          %p242 = pneg %p44
        $region42: #{tpu_custom_call.1} parent=39 // pred_check_branch
          %244 = sbr.rel (%p242) target = $region44
        $region43: #{tpu_custom_call.1} parent=39 // pred_region
          %246 = dma.done %s238, 256
        $region44: #{tpu_custom_call.1} parent=39 // pred_fallthru
          _
        // Predicated region
        $region45: #{tpu_custom_call.1} parent=39 // pred_check
          %p247 = pneg %p65
        $region46: #{tpu_custom_call.1} parent=39 // pred_check_branch
          %249 = sbr.rel (%p247) target = $region48
        $region47: #{tpu_custom_call.1} parent=39 // pred_region
          %251 = dma.done [#allocation6], 3072
        $region48: #{tpu_custom_call.1} parent=39 // pred_fallthru
          _
        // Predicated region
        $region49: #{tpu_custom_call.1} parent=39 // pred_check
          %p252 = pneg %p107
        $region50: #{tpu_custom_call.1} parent=39 // pred_check_branch
          %254 = sbr.rel (%p252) target = $region52
        $region51: #{tpu_custom_call.1} parent=39 // pred_region
          %256 = dma.done [#allocation6], 3072
        $region52: #{tpu_custom_call.1} parent=39 // pred_fallthru
          _
        %s257 = sand.u32 %s31, 1
        %s258 = scalar_lea.sflag [#allocation3], %s257
        %s259 = sand.u32 %s31, 1
        %s260 = smul.addr %s259, 16
        %s261 = scalar_lea.vmem [#allocation2], %s260
        %p262 = pneg %p44
        %p263 = pneg %p41
        %p264 = pneg %p65
        %p265 = pneg %p62
        %p266 = pneg %p86
        %p267 = pneg %p83
        %p268 = pneg %p107
        %p269 = pneg %p104
        %p270 = pneg %p128
        %p271 = pneg %p125
        %p272 = pneg %p154
        %p273 = pneg %p151
        %s274 = sand.u32 %s141, 1
        %s275 = scalar_lea.sflag [#allocation4], %s274
        %s276 = sand.u32 %s141, 1
        %s277 = smul.addr %s276, 32
        %s278 = scalar_lea.vmem [#allocation8], %s277
        %s279 = smul.u32 2, %s23
        %s280 = smul.u32 2, %s23
        %v281 = vld [vmem:[%s241] sm:$0xf]
        %v282 = vld [vmem:[%s241 + $0x4] sm:$0xf]
        %v283 = vld [vmem:[%s241 + $0x8] sm:$0xf]
        %v284 = vld [vmem:[%s241 + $0xc] sm:$0xf]
        %v285 = vunpack.c.l.bf16 %v281
        %v286 = vunpack.c.l.bf16 %v282
        %v287 = vunpack.c.l.bf16 %v283
        %v288 = vunpack.c.l.bf16 %v284
        %v289 = vlaneseq
        %v290 = vshrl.u32 %v289, 7
        %v291 = vadd.s32 %v290, 8
        %v292 = vadd.s32 %v290, 16
        %v293 = vadd.s32 %v290, 24
        %vm294 = vcmp.lt.s32.totalorder %v290, 0
        %v295 = vsub.s32 0, %v290
        %v296 = vsel %vm294, %v295, %v290
        %v297 = vshrl.u32 %v296, 4
        %v298 = vand.u32 %v296, 15
        %v299 = vsub.s32 0, %v298
        %v300 = vsel %vm294, %v299, %v298
        %vm301 = vcmp.lt.s32.totalorder %v291, 0
        %v302 = vsub.s32 0, %v291
        %v303 = vsel %vm301, %v302, %v291
        %v304 = vshrl.u32 %v303, 4
        %v305 = vand.u32 %v303, 15
        %v306 = vsub.s32 0, %v305
        %v307 = vsel %vm301, %v306, %v305
        %vm308 = vcmp.lt.s32.totalorder %v292, 0
        %v309 = vsub.s32 0, %v292
        %v310 = vsel %vm308, %v309, %v292
        %v311 = vshrl.u32 %v310, 4
        %v312 = vand.u32 %v310, 15
        %v313 = vsub.s32 0, %v312
        %v314 = vsel %vm308, %v313, %v312
        %vm315 = vcmp.lt.s32.totalorder %v293, 0
        %v316 = vsub.s32 0, %v293
        %v317 = vsel %vm315, %v316, %v293
        %v318 = vshrl.u32 %v317, 4
        %v319 = vand.u32 %v317, 15
        %v320 = vsub.s32 0, %v319
        %v321 = vsel %vm315, %v320, %v319
        %vm322 = vcmp.ne.s32.totalorder %v300, 0
        %vm323 = vcmp.ne.s32.totalorder %v307, 0
        %vm324 = vcmp.ne.s32.totalorder %v314, 0
        %vm325 = vcmp.ne.s32.totalorder %v321, 0
        %vm326 = vcmp.lt.s32.totalorder %v300, 0
        %vm327 = vcmp.lt.s32.totalorder %v307, 0
        %vm328 = vcmp.lt.s32.totalorder %v314, 0
        %vm329 = vcmp.lt.s32.totalorder %v321, 0
        %vm330 = vmand %vm326, %vm322
        %vm331 = vmand %vm327, %vm323
        %vm332 = vmand %vm328, %vm324
        %vm333 = vmand %vm329, %vm325
        %v334 = vadd.s32 %v300, 16
        %v335 = vadd.s32 %v307, 16
        %v336 = vadd.s32 %v314, 16
        %v337 = vadd.s32 %v321, 16
        %v338 = vsel %vm330, %v334, %v300
        %v339 = vsel %vm331, %v335, %v307
        %v340 = vsel %vm332, %v336, %v314
        %v341 = vsel %vm333, %v337, %v321
        %vm342 = vcmp.ne.s32.totalorder %v338, 0
        %vm343 = vcmp.ne.s32.totalorder %v339, 0
        %vm344 = vcmp.ne.s32.totalorder %v340, 0
        %vm345 = vcmp.ne.s32.totalorder %v341, 0
        %vm346 = vcmp.ne.s32.totalorder %v338, 15
        %vm347 = vcmp.ne.s32.totalorder %v339, 15
        %vm348 = vcmp.ne.s32.totalorder %v340, 15
        %vm349 = vcmp.ne.s32.totalorder %v341, 15
        %v350 = vrot.slane %v285, 7
        %v351 = vrot.slane %v286, 7
        %v352 = vrot.slane %v287, 7
        %v353 = vrot.slane %v288, 7
        %vm354 = vcmp.lt.s32.totalorder %v290, 1
        %v355 = vsel %vm354, %v352, %v353
        %v356 = vsel %vm354, %v351, %v352
        %v357 = vsel %vm354, %v350, %v351
        %v358 = vsel %vm354, %v353, %v350
        %v359 = vsel %vm342, %v358, 0.0
        %v360 = vsel %vm343, %v357, 0.0
        %v361 = vsel %vm344, %v356, 0.0
        %v362 = vsel %vm345, %v355, 0.0
        %v363 = vrot.slane %v285, 1
        %v364 = vrot.slane %v286, 1
        %v365 = vrot.slane %v287, 1
        %v366 = vrot.slane %v288, 1
        %vm367 = vcmp.lt.s32.totalorder %v290, 7
        %v368 = vsel %vm367, %v365, %v366
        %v369 = vsel %vm367, %v364, %v365
        %v370 = vsel %vm367, %v363, %v364
        %v371 = vsel %vm367, %v366, %v363
        %v372 = vsel %vm346, %v370, 0.0
        %v373 = vsel %vm347, %v369, 0.0
        %v374 = vsel %vm348, %v368, 0.0
        %v375 = vsel %vm349, %v371, 0.0
        %v376 = vpack.c.bf16 %v360, %v359
        %v377 = vpack.c.bf16 %v362, %v361
        %v378 = vld [vmem:[#allocation5] sm:$0xf]
        %v379 = vld [vmem:[#allocation5 + $0x4] sm:$0xf]
        %v380 = vld [vmem:[#allocation5 + $0x8] sm:$0xf]
        %v381 = vld [vmem:[#allocation5 + $0xc] sm:$0xf]
        %v382 = vld [vmem:[#allocation5 + $0x10] sm:$0xf]
        %v383 = vld [vmem:[#allocation5 + $0x14] sm:$0xf]
        %v384 = vld [vmem:[#allocation5 + $0x18] sm:$0xf]
        %v385 = vld [vmem:[#allocation5 + $0x1c] sm:$0xf]
        %v386 = vld [vmem:[#allocation5 + $0x20] sm:$0xf]
        %v387 = vld [vmem:[#allocation5 + $0x24] sm:$0xf]
        %v388 = vld [vmem:[#allocation5 + $0x28] sm:$0xf]
        %v389 = vld [vmem:[#allocation5 + $0x2c] sm:$0xf]
        %v390 = vld [vmem:[#allocation5 + $0x30] sm:$0xf]
        %v391 = vld [vmem:[#allocation5 + $0x34] sm:$0xf]
        %v392 = vld [vmem:[#allocation5 + $0x38] sm:$0xf]
        %v393 = vld [vmem:[#allocation5 + $0x3c] sm:$0xf]
        %v394 = vpack.c.bf16 %v286, %v285
        %v395 = vpack.c.bf16 %v288, %v287
        %v396 = vld [vmem:[#allocation5 + $0x40] sm:$0xf]
        %v397 = vld [vmem:[#allocation5 + $0x44] sm:$0xf]
        %v398 = vld [vmem:[#allocation5 + $0x48] sm:$0xf]
        %v399 = vld [vmem:[#allocation5 + $0x4c] sm:$0xf]
        %v400 = vld [vmem:[#allocation5 + $0x50] sm:$0xf]
        %v401 = vld [vmem:[#allocation5 + $0x54] sm:$0xf]
        %v402 = vld [vmem:[#allocation5 + $0x58] sm:$0xf]
        %v403 = vld [vmem:[#allocation5 + $0x5c] sm:$0xf]
        %v404 = vld [vmem:[#allocation5 + $0x60] sm:$0xf]
        %v405 = vld [vmem:[#allocation5 + $0x64] sm:$0xf]
        %v406 = vld [vmem:[#allocation5 + $0x68] sm:$0xf]
        %v407 = vld [vmem:[#allocation5 + $0x6c] sm:$0xf]
        %v408 = vld [vmem:[#allocation5 + $0x70] sm:$0xf]
        %v409 = vld [vmem:[#allocation5 + $0x74] sm:$0xf]
        %v410 = vld [vmem:[#allocation5 + $0x78] sm:$0xf]
        %v411 = vld [vmem:[#allocation5 + $0x7c] sm:$0xf]
        %v428 = vunpack.c.l.b16 %v396
        %v429 = vunpack.c.l.b16 %v397
        %v430 = vunpack.c.l.b16 %v398
        %v431 = vunpack.c.l.b16 %v399
        %v432 = vunpack.c.l.b16 %v400
        %v433 = vunpack.c.l.b16 %v401
        %v434 = vunpack.c.l.b16 %v402
        %v435 = vunpack.c.l.b16 %v403
        %v436 = vunpack.c.l.b16 %v404
        %v437 = vunpack.c.l.b16 %v405
        %v438 = vunpack.c.l.b16 %v406
        %v439 = vunpack.c.l.b16 %v407
        %v440 = vunpack.c.l.b16 %v408
        %v441 = vunpack.c.l.b16 %v409
        %v442 = vunpack.c.l.b16 %v410
        %v443 = vunpack.c.l.b16 %v411
        %v444 = vpack.c.b16 %v429, %v428
        %v445 = vpack.c.b16 %v431, %v430
        %v446 = vpack.c.b16 %v433, %v432
        %v447 = vpack.c.b16 %v435, %v434
        %v448 = vpack.c.b16 %v437, %v436
        %v449 = vpack.c.b16 %v439, %v438
        %v450 = vpack.c.b16 %v441, %v440
        %v451 = vpack.c.b16 %v443, %v442
        %460 = vmatpush.bf16.msra.mxu0 %v451
        %461 = vmatpush.bf16.msra.mxu0 %v450
        %462 = vmatpush.bf16.msra.mxu0 %v449
        %463 = vmatpush.bf16.msra.mxu0 %v448
        %464 = vmatpush.bf16.msra.mxu0 %v447
        %465 = vmatpush.bf16.msra.mxu0 %v446
        %466 = vmatpush.bf16.msra.mxu0 %v445
        %467 = vmatpush.bf16.msra.mxu0 %v444
        %468 = vmatmul.bf16.gmra.mxu0 %v394
        %v469 = vpop.f32.mrf.mxu0
        %v470 = vadd.f32 0.0, %v469
        %v471 = vpop.f32.mrf.mxu0
        %v472 = vadd.f32 0.0, %v471
        %473 = vmatmul.bf16.gmra.mxu0 %v395
        %v474 = vpop.f32.mrf.mxu0
        %v475 = vadd.f32 0.0, %v474
        %v476 = vpop.f32.mrf.mxu0
        %v477 = vadd.f32 0.0, %v476
        %478 = vdwg.mxu0
        %v495 = vunpack.c.l.b16 %v378
        %v496 = vunpack.c.l.b16 %v379
        %v497 = vunpack.c.l.b16 %v380
        %v498 = vunpack.c.l.b16 %v381
        %v499 = vunpack.c.l.b16 %v382
        %v500 = vunpack.c.l.b16 %v383
        %v501 = vunpack.c.l.b16 %v384
        %v502 = vunpack.c.l.b16 %v385
        %v503 = vunpack.c.l.b16 %v386
        %v504 = vunpack.c.l.b16 %v387
        %v505 = vunpack.c.l.b16 %v388
        %v506 = vunpack.c.l.b16 %v389
        %v507 = vunpack.c.l.b16 %v390
        %v508 = vunpack.c.l.b16 %v391
        %v509 = vunpack.c.l.b16 %v392
        %v510 = vunpack.c.l.b16 %v393
        %v511 = vpack.c.b16 %v496, %v495
        %v512 = vpack.c.b16 %v498, %v497
        %v513 = vpack.c.b16 %v500, %v499
        %v514 = vpack.c.b16 %v502, %v501
        %v515 = vpack.c.b16 %v504, %v503
        %v516 = vpack.c.b16 %v506, %v505
        %v517 = vpack.c.b16 %v508, %v507
        %v518 = vpack.c.b16 %v510, %v509
        %527 = vmatpush.bf16.msra.mxu0 %v518
        %528 = vmatpush.bf16.msra.mxu0 %v517
        %529 = vmatpush.bf16.msra.mxu0 %v516
        %530 = vmatpush.bf16.msra.mxu0 %v515
        %531 = vmatpush.bf16.msra.mxu0 %v514
        %532 = vmatpush.bf16.msra.mxu0 %v513
        %533 = vmatpush.bf16.msra.mxu0 %v512
        %534 = vmatpush.bf16.msra.mxu0 %v511
        %535 = vmatmul.bf16.gmra.mxu0 %v376
        %v536 = vpop.f32.mrf.mxu0
        %v537 = vadd.f32 %v470, %v536
        %v538 = vpop.f32.mrf.mxu0
        %v539 = vadd.f32 %v472, %v538
        %540 = vmatmul.bf16.gmra.mxu0 %v377
        %v541 = vpop.f32.mrf.mxu0
        %v542 = vadd.f32 %v475, %v541
        %v543 = vpop.f32.mrf.mxu0
        %v544 = vadd.f32 %v477, %v543
        %545 = vdwg.mxu0
        %v546 = vpack.c.bf16 %v373, %v372
        %v547 = vpack.c.bf16 %v375, %v374
        %v548 = vld [vmem:[#allocation5 + $0x80] sm:$0xf]
        %v549 = vld [vmem:[#allocation5 + $0x84] sm:$0xf]
        %v550 = vld [vmem:[#allocation5 + $0x88] sm:$0xf]
        %v551 = vld [vmem:[#allocation5 + $0x8c] sm:$0xf]
        %v552 = vld [vmem:[#allocation5 + $0x90] sm:$0xf]
        %v553 = vld [vmem:[#allocation5 + $0x94] sm:$0xf]
        %v554 = vld [vmem:[#allocation5 + $0x98] sm:$0xf]
        %v555 = vld [vmem:[#allocation5 + $0x9c] sm:$0xf]
        %v556 = vld [vmem:[#allocation5 + $0xa0] sm:$0xf]
        %v557 = vld [vmem:[#allocation5 + $0xa4] sm:$0xf]
        %v558 = vld [vmem:[#allocation5 + $0xa8] sm:$0xf]
        %v559 = vld [vmem:[#allocation5 + $0xac] sm:$0xf]
        %v560 = vld [vmem:[#allocation5 + $0xb0] sm:$0xf]
        %v561 = vld [vmem:[#allocation5 + $0xb4] sm:$0xf]
        %v562 = vld [vmem:[#allocation5 + $0xb8] sm:$0xf]
        %v563 = vld [vmem:[#allocation5 + $0xbc] sm:$0xf]
        %v580 = vunpack.c.l.b16 %v548
        %v581 = vunpack.c.l.b16 %v549
        %v582 = vunpack.c.l.b16 %v550
        %v583 = vunpack.c.l.b16 %v551
        %v584 = vunpack.c.l.b16 %v552
        %v585 = vunpack.c.l.b16 %v553
        %v586 = vunpack.c.l.b16 %v554
        %v587 = vunpack.c.l.b16 %v555
        %v588 = vunpack.c.l.b16 %v556
        %v589 = vunpack.c.l.b16 %v557
        %v590 = vunpack.c.l.b16 %v558
        %v591 = vunpack.c.l.b16 %v559
        %v592 = vunpack.c.l.b16 %v560
        %v593 = vunpack.c.l.b16 %v561
        %v594 = vunpack.c.l.b16 %v562
        %v595 = vunpack.c.l.b16 %v563
        %v596 = vpack.c.b16 %v581, %v580
        %v597 = vpack.c.b16 %v583, %v582
        %v598 = vpack.c.b16 %v585, %v584
        %v599 = vpack.c.b16 %v587, %v586
        %v600 = vpack.c.b16 %v589, %v588
        %v601 = vpack.c.b16 %v591, %v590
        %v602 = vpack.c.b16 %v593, %v592
        %v603 = vpack.c.b16 %v595, %v594
        %612 = vmatpush.bf16.msra.mxu0 %v603
        %613 = vmatpush.bf16.msra.mxu0 %v602
        %614 = vmatpush.bf16.msra.mxu0 %v601
        %615 = vmatpush.bf16.msra.mxu0 %v600
        %616 = vmatpush.bf16.msra.mxu0 %v599
        %617 = vmatpush.bf16.msra.mxu0 %v598
        %618 = vmatpush.bf16.msra.mxu0 %v597
        %619 = vmatpush.bf16.msra.mxu0 %v596
        %620 = vmatmul.bf16.gmra.mxu0 %v546
        %v621 = vpop.f32.mrf.mxu0
        %v622 = vadd.f32 0.0, %v621
        %v623 = vpop.f32.mrf.mxu0
        %v624 = vadd.f32 0.0, %v623
        %625 = vmatmul.bf16.gmra.mxu0 %v547
        %v626 = vpop.f32.mrf.mxu0
        %v627 = vadd.f32 0.0, %v626
        %v628 = vpop.f32.mrf.mxu0
        %v629 = vadd.f32 0.0, %v628
        %630 = vdwg.mxu0
        %v631 = vadd.f32 %v537, %v622
        %v632 = vadd.f32 %v539, %v624
        %v633 = vadd.f32 %v542, %v627
        %v634 = vadd.f32 %v544, %v629
        %v635 = vld [vmem:[%s2] sm:$0x1]
        %v637 = vperm.slane %v635, 0
        %v639 = vadd.f32 %v631, %v637
        %v640 = vadd.f32 %v632, %v637
        %v641 = vadd.f32 %v633, %v637
        %v642 = vadd.f32 %v634, %v637
        %v643 = vmax.f32 %v639, 0.0
        %v644 = vmax.f32 %v640, 0.0
        %v645 = vmax.f32 %v641, 0.0
        %v646 = vmax.f32 %v642, 0.0
        %v647 = vrot.slane %v643, 7
        %v648 = vrot.slane %v644, 7
        %v649 = vrot.slane %v645, 7
        %v650 = vrot.slane %v646, 7
        %v651 = vsel %vm354, %v649, %v650
        %v652 = vsel %vm354, %v648, %v649
        %v653 = vsel %vm354, %v647, %v648
        %v654 = vsel %vm354, %v650, %v647
        %v655 = vsel %vm342, %v654, 0.0
        %v656 = vsel %vm343, %v653, 0.0
        %v657 = vsel %vm344, %v652, 0.0
        %v658 = vsel %vm345, %v651, 0.0
        %v659 = vrot.slane %v643, 1
        %v660 = vrot.slane %v644, 1
        %v661 = vrot.slane %v645, 1
        %v662 = vrot.slane %v646, 1
        %v663 = vsel %vm367, %v661, %v662
        %v664 = vsel %vm367, %v660, %v661
        %v665 = vsel %vm367, %v659, %v660
        %v666 = vsel %vm367, %v662, %v659
        %v667 = vsel %vm346, %v665, 0.0
        %v668 = vsel %vm347, %v664, 0.0
        %v669 = vsel %vm348, %v663, 0.0
        %v670 = vsel %vm349, %v666, 0.0
        %v671 = vpack.c.bf16 %v656, %v655
        %v672 = vpack.c.bf16 %v658, %v657
        %v673 = vld [vmem:[#allocation7] sm:$0xf]
        %v674 = vld [vmem:[#allocation7 + $0x4] sm:$0xf]
        %v675 = vld [vmem:[#allocation7 + $0x8] sm:$0xf]
        %v676 = vld [vmem:[#allocation7 + $0xc] sm:$0xf]
        %v677 = vld [vmem:[#allocation7 + $0x10] sm:$0xf]
        %v678 = vld [vmem:[#allocation7 + $0x14] sm:$0xf]
        %v679 = vld [vmem:[#allocation7 + $0x18] sm:$0xf]
        %v680 = vld [vmem:[#allocation7 + $0x1c] sm:$0xf]
        %v681 = vld [vmem:[#allocation7 + $0x20] sm:$0xf]
        %v682 = vld [vmem:[#allocation7 + $0x24] sm:$0xf]
        %v683 = vld [vmem:[#allocation7 + $0x28] sm:$0xf]
        %v684 = vld [vmem:[#allocation7 + $0x2c] sm:$0xf]
        %v685 = vld [vmem:[#allocation7 + $0x30] sm:$0xf]
        %v686 = vld [vmem:[#allocation7 + $0x34] sm:$0xf]
        %v687 = vld [vmem:[#allocation7 + $0x38] sm:$0xf]
        %v688 = vld [vmem:[#allocation7 + $0x3c] sm:$0xf]
        %v689 = vpack.c.bf16 %v644, %v643
        %v690 = vpack.c.bf16 %v646, %v645
        %v691 = vld [vmem:[#allocation7 + $0x40] sm:$0xf]
        %v692 = vld [vmem:[#allocation7 + $0x44] sm:$0xf]
        %v693 = vld [vmem:[#allocation7 + $0x48] sm:$0xf]
        %v694 = vld [vmem:[#allocation7 + $0x4c] sm:$0xf]
        %v695 = vld [vmem:[#allocation7 + $0x50] sm:$0xf]
        %v696 = vld [vmem:[#allocation7 + $0x54] sm:$0xf]
        %v697 = vld [vmem:[#allocation7 + $0x58] sm:$0xf]
        %v698 = vld [vmem:[#allocation7 + $0x5c] sm:$0xf]
        %v699 = vld [vmem:[#allocation7 + $0x60] sm:$0xf]
        %v700 = vld [vmem:[#allocation7 + $0x64] sm:$0xf]
        %v701 = vld [vmem:[#allocation7 + $0x68] sm:$0xf]
        %v702 = vld [vmem:[#allocation7 + $0x6c] sm:$0xf]
        %v703 = vld [vmem:[#allocation7 + $0x70] sm:$0xf]
        %v704 = vld [vmem:[#allocation7 + $0x74] sm:$0xf]
        %v705 = vld [vmem:[#allocation7 + $0x78] sm:$0xf]
        %v706 = vld [vmem:[#allocation7 + $0x7c] sm:$0xf]
        %v723 = vunpack.c.l.b16 %v691
        %v724 = vunpack.c.l.b16 %v692
        %v725 = vunpack.c.l.b16 %v693
        %v726 = vunpack.c.l.b16 %v694
        %v727 = vunpack.c.l.b16 %v695
        %v728 = vunpack.c.l.b16 %v696
        %v729 = vunpack.c.l.b16 %v697
        %v730 = vunpack.c.l.b16 %v698
        %v731 = vunpack.c.l.b16 %v699
        %v732 = vunpack.c.l.b16 %v700
        %v733 = vunpack.c.l.b16 %v701
        %v734 = vunpack.c.l.b16 %v702
        %v735 = vunpack.c.l.b16 %v703
        %v736 = vunpack.c.l.b16 %v704
        %v737 = vunpack.c.l.b16 %v705
        %v738 = vunpack.c.l.b16 %v706
        %v739 = vpack.c.b16 %v724, %v723
        %v740 = vpack.c.b16 %v726, %v725
        %v741 = vpack.c.b16 %v728, %v727
        %v742 = vpack.c.b16 %v730, %v729
        %v743 = vpack.c.b16 %v732, %v731
        %v744 = vpack.c.b16 %v734, %v733
        %v745 = vpack.c.b16 %v736, %v735
        %v746 = vpack.c.b16 %v738, %v737
        %755 = vmatpush.bf16.msra.mxu0 %v746
        %756 = vmatpush.bf16.msra.mxu0 %v745
        %757 = vmatpush.bf16.msra.mxu0 %v744
        %758 = vmatpush.bf16.msra.mxu0 %v743
        %759 = vmatpush.bf16.msra.mxu0 %v742
        %760 = vmatpush.bf16.msra.mxu0 %v741
        %761 = vmatpush.bf16.msra.mxu0 %v740
        %762 = vmatpush.bf16.msra.mxu0 %v739
        %763 = vmatmul.bf16.gmra.mxu0 %v689
        %v764 = vpop.f32.mrf.mxu0
        %v765 = vadd.f32 0.0, %v764
        %v766 = vpop.f32.mrf.mxu0
        %v767 = vadd.f32 0.0, %v766
        %768 = vmatmul.bf16.gmra.mxu0 %v690
        %v769 = vpop.f32.mrf.mxu0
        %v770 = vadd.f32 0.0, %v769
        %v771 = vpop.f32.mrf.mxu0
        %v772 = vadd.f32 0.0, %v771
        %773 = vdwg.mxu0
        %v790 = vunpack.c.l.b16 %v673
        %v791 = vunpack.c.l.b16 %v674
        %v792 = vunpack.c.l.b16 %v675
        %v793 = vunpack.c.l.b16 %v676
        %v794 = vunpack.c.l.b16 %v677
        %v795 = vunpack.c.l.b16 %v678
        %v796 = vunpack.c.l.b16 %v679
        %v797 = vunpack.c.l.b16 %v680
        %v798 = vunpack.c.l.b16 %v681
        %v799 = vunpack.c.l.b16 %v682
        %v800 = vunpack.c.l.b16 %v683
        %v801 = vunpack.c.l.b16 %v684
        %v802 = vunpack.c.l.b16 %v685
        %v803 = vunpack.c.l.b16 %v686
        %v804 = vunpack.c.l.b16 %v687
        %v805 = vunpack.c.l.b16 %v688
        %v806 = vpack.c.b16 %v791, %v790
        %v807 = vpack.c.b16 %v793, %v792
        %v808 = vpack.c.b16 %v795, %v794
        %v809 = vpack.c.b16 %v797, %v796
        %v810 = vpack.c.b16 %v799, %v798
        %v811 = vpack.c.b16 %v801, %v800
        %v812 = vpack.c.b16 %v803, %v802
        %v813 = vpack.c.b16 %v805, %v804
        %822 = vmatpush.bf16.msra.mxu0 %v813
        %823 = vmatpush.bf16.msra.mxu0 %v812
        %824 = vmatpush.bf16.msra.mxu0 %v811
        %825 = vmatpush.bf16.msra.mxu0 %v810
        %826 = vmatpush.bf16.msra.mxu0 %v809
        %827 = vmatpush.bf16.msra.mxu0 %v808
        %828 = vmatpush.bf16.msra.mxu0 %v807
        %829 = vmatpush.bf16.msra.mxu0 %v806
        %830 = vmatmul.bf16.gmra.mxu0 %v671
        %v831 = vpop.f32.mrf.mxu0
        %v832 = vadd.f32 %v765, %v831
        %v833 = vpop.f32.mrf.mxu0
        %v834 = vadd.f32 %v767, %v833
        %835 = vmatmul.bf16.gmra.mxu0 %v672
        %v836 = vpop.f32.mrf.mxu0
        %v837 = vadd.f32 %v770, %v836
        %v838 = vpop.f32.mrf.mxu0
        %v839 = vadd.f32 %v772, %v838
        %840 = vdwg.mxu0
        %v841 = vpack.c.bf16 %v668, %v667
        %v842 = vpack.c.bf16 %v670, %v669
        %v843 = vld [vmem:[#allocation7 + $0x80] sm:$0xf]
        %v844 = vld [vmem:[#allocation7 + $0x84] sm:$0xf]
        %v845 = vld [vmem:[#allocation7 + $0x88] sm:$0xf]
        %v846 = vld [vmem:[#allocation7 + $0x8c] sm:$0xf]
        %v847 = vld [vmem:[#allocation7 + $0x90] sm:$0xf]
        %v848 = vld [vmem:[#allocation7 + $0x94] sm:$0xf]
        %v849 = vld [vmem:[#allocation7 + $0x98] sm:$0xf]
        %v850 = vld [vmem:[#allocation7 + $0x9c] sm:$0xf]
        %v851 = vld [vmem:[#allocation7 + $0xa0] sm:$0xf]
        %v852 = vld [vmem:[#allocation7 + $0xa4] sm:$0xf]
        %v853 = vld [vmem:[#allocation7 + $0xa8] sm:$0xf]
        %v854 = vld [vmem:[#allocation7 + $0xac] sm:$0xf]
        %v855 = vld [vmem:[#allocation7 + $0xb0] sm:$0xf]
        %v856 = vld [vmem:[#allocation7 + $0xb4] sm:$0xf]
        %v857 = vld [vmem:[#allocation7 + $0xb8] sm:$0xf]
        %v858 = vld [vmem:[#allocation7 + $0xbc] sm:$0xf]
        %v875 = vunpack.c.l.b16 %v843
        %v876 = vunpack.c.l.b16 %v844
        %v877 = vunpack.c.l.b16 %v845
        %v878 = vunpack.c.l.b16 %v846
        %v879 = vunpack.c.l.b16 %v847
        %v880 = vunpack.c.l.b16 %v848
        %v881 = vunpack.c.l.b16 %v849
        %v882 = vunpack.c.l.b16 %v850
        %v883 = vunpack.c.l.b16 %v851
        %v884 = vunpack.c.l.b16 %v852
        %v885 = vunpack.c.l.b16 %v853
        %v886 = vunpack.c.l.b16 %v854
        %v887 = vunpack.c.l.b16 %v855
        %v888 = vunpack.c.l.b16 %v856
        %v889 = vunpack.c.l.b16 %v857
        %v890 = vunpack.c.l.b16 %v858
        %v891 = vpack.c.b16 %v876, %v875
        %v892 = vpack.c.b16 %v878, %v877
        %v893 = vpack.c.b16 %v880, %v879
        %v894 = vpack.c.b16 %v882, %v881
        %v895 = vpack.c.b16 %v884, %v883
        %v896 = vpack.c.b16 %v886, %v885
        %v897 = vpack.c.b16 %v888, %v887
        %v898 = vpack.c.b16 %v890, %v889
        %907 = vmatpush.bf16.msra.mxu0 %v898
        %908 = vmatpush.bf16.msra.mxu0 %v897
        %909 = vmatpush.bf16.msra.mxu0 %v896
        %910 = vmatpush.bf16.msra.mxu0 %v895
        %911 = vmatpush.bf16.msra.mxu0 %v894
        %912 = vmatpush.bf16.msra.mxu0 %v893
        %913 = vmatpush.bf16.msra.mxu0 %v892
        %914 = vmatpush.bf16.msra.mxu0 %v891
        %915 = vmatmul.bf16.gmra.mxu0 %v841
        %v916 = vpop.f32.mrf.mxu0
        %v917 = vadd.f32 0.0, %v916
        %v918 = vpop.f32.mrf.mxu0
        %v919 = vadd.f32 0.0, %v918
        %920 = vmatmul.bf16.gmra.mxu0 %v842
        %v921 = vpop.f32.mrf.mxu0
        %v922 = vadd.f32 0.0, %v921
        %v923 = vpop.f32.mrf.mxu0
        %v924 = vadd.f32 0.0, %v923
        %925 = vdwg.mxu0
        %v926 = vadd.f32 %v832, %v917
        %v927 = vadd.f32 %v834, %v919
        %v928 = vadd.f32 %v837, %v922
        %v929 = vadd.f32 %v839, %v924
        %v930 = vld [vmem:[%s4] sm:$0x1]
        %v932 = vperm.slane %v930, 0
        %v934 = vadd.f32 %v926, %v932
        %v935 = vadd.f32 %v927, %v932
        %v936 = vadd.f32 %v928, %v932
        %v937 = vadd.f32 %v929, %v932
        %v938 = vadd.f32 %v934, %v285
        %v939 = vadd.f32 %v935, %v286
        %v940 = vadd.f32 %v936, %v287
        %v941 = vadd.f32 %v937, %v288
        %v942 = vmax.f32 %v938, 0.0
        %v943 = vmax.f32 %v939, 0.0
        %v944 = vmax.f32 %v940, 0.0
        %v945 = vmax.f32 %v941, 0.0
        %946 = vst [vmem:[%s278] sm:$0xff] %v942
        %947 = vst [vmem:[%s278 + $0x8] sm:$0xff] %v943
        %948 = vst [vmem:[%s278 + $0x10] sm:$0xff] %v944
        %949 = vst [vmem:[%s278 + $0x18] sm:$0xff] %v945
        %s950 = sand.u32 %s141, 1
        %s951 = scalar_lea.sflag [#allocation4], %s950
        %s952 = sand.u32 %s141, 1
        %s953 = smul.addr %s952, 32
        %s954 = scalar_lea.vmem [#allocation8], %s953
        // Predicated region
        $region53: #{tpu_custom_call.1} parent=39 // pred_check
          %p955 = pneg %p151
        $region54: #{tpu_custom_call.1} parent=39 // pred_check_branch
          %957 = sbr.rel (%p955) target = $region56
        $region55: #{tpu_custom_call.1} parent=39 // pred_region
          %s958 = smul.u32 2, %s23
          %960 = vsyncadd %s951, 0
          %s961 = smul.addr %s958, 2
          %s962 = smul.addr %s961, 8
          %s963 = scalar_lea.hbm %s5, %s962
          %s964 = sshll.u32 %s954, 4
          %s965 = int_to_ptr.vmem [resolvable:$true] %s964
          %s966 = sshll.u32 %s963, 4
          %s967 = int_to_ptr.hbm [resolvable:$true] %s966
          %972 = dma.vmem_to_hbm [thread:$0]  %s965, 512, %s967, %s951, 128, 128, 8
        $region56: #{tpu_custom_call.1} parent=39 // pred_fallthru
          _
      $region40: #{tpu_custom_call.1} parent=5 // pred_fallthru
        _
      %p973 = scmp.le.s32.totalorder 2, %s18
      // Predicated region
      $region57: #{tpu_custom_call.1} parent=5 // pred_check
        %p974 = pneg %p973
      $region58: #{tpu_custom_call.1} parent=5 // pred_check_branch
        %976 = sbr.rel (%p974) target = $region60
      $region59: #{tpu_custom_call.1} parent=5 // pred_region
        %s977 = ssub.s32 %s18, 2
        // Predicated region
        $region61: #{tpu_custom_call.1} parent=59 // pred_check
          %p978 = pneg %p157
        $region62: #{tpu_custom_call.1} parent=59 // pred_check_branch
          %980 = sbr.rel (%p978) target = $region64
        $region63: #{tpu_custom_call.1} parent=59 // pred_region
          %s981 = sand.u32 %s142, 1
          %s982 = scalar_lea.sflag [#allocation4], %s981
          %s983 = sand.u32 %s142, 1
          %s984 = smul.addr %s983, 32
          %s985 = scalar_lea.vmem [#allocation8], %s984
          %987 = dma.done %s982, 512
        $region64: #{tpu_custom_call.1} parent=59 // pred_fallthru
          _
      $region60: #{tpu_custom_call.1} parent=5 // pred_fallthru
        _
    $region6: #{tpu_custom_call.1} parent=1 // loop_footer
      %s22 = sadd.s32 1, %s18
    $region7: #{tpu_custom_call.1} parent=1 // loop_footer_branch
      %17 = sbr.rel target = $region3
    $region8: #{tpu_custom_call.1} parent=1 // loop_exit
      _
    %988 = vsyncpa [#allocation3], 1
    %s989 = scalar_lea.sflag [#allocation3], 1
    %990 = vsyncpa %s989, 1
    %991 = vsyncpa [#allocation6], 1
    %992 = vsyncpa [#allocation4], 1
    %s993 = scalar_lea.sflag [#allocation4], 1
    %994 = vsyncpa %s993, 1

</llo_original>
